<compile_context>
chip_gen: v7x
topology: tpu7x:2x2x1
jax: 0.10.0
libtpu: 0.0.40
codegen_flags: <defaults>
</compile_context>

<pallas_src>
import math

import numpy as np
import jax
import jax.numpy as jnp
from jax import lax
from jax.experimental import pallas as pl
from jax.experimental.pallas import tpu as pltpu

OUT_PAD = 128  # lane-padded width of the kernel output (sliced to n_classes on host)


# ---------------------------------------------------------------------------
# Host-side structured-matrix builders (pure numpy, run once outside jit)
# ---------------------------------------------------------------------------

def _conv_band_and_bias(w_eff, b_eff, w_in):
    """3x3/s1/p1 conv as 3 banded matmuls over the lane (W*Cin) dimension.

    Input lanes  : cin*wi + ci
    Output lanes : (w_in//2)*cout*(w%2) + cout*(w//2) + co   (even-w | odd-w halves,
                   so the following 2x2 W-pool is just a max of the two lane halves).
    W zero-padding is implicit (out-of-range taps simply have no band entry)."""
    cout, cin, kh, kw = w_eff.shape
    l_in, l_out = cin * w_in, cout * w_in
    m = np.zeros((kh, l_in, l_out), np.float32)
    for ki in range(kh):
        for w in range(w_in):
            ob = (w_in // 2) * cout * (w % 2) + cout * (w // 2)
            for kj in range(kw):
                wi = w + kj - 1
                if 0 <= wi < w_in:
                    for ci in range(cin):
                        m[ki, cin * wi + ci, ob:ob + cout] = w_eff[:, ci, ki, kj]
    bias_row = np.tile(b_eff.astype(np.float32), w_in)[None, :]  # lane % cout == co
    return m, bias_row


def _row_shift(b_tile, h):
    """0/1 block-diagonal matrices implementing the ki=0 / ki=2 row shifts of a
    3x3 conv (zero rows at the per-image H borders = zero padding in H)."""
    r = b_tile * h
    s = np.zeros((2, r, r), np.float32)
    for b in range(b_tile):
        for hh in range(h):
            row = b * h + hh
            if hh > 0:
                s[0, row, row - 1] = 1.0        # ki = 0 reads h-1
            if hh + 1 < h:
                s[1, row, row + 1] = 1.0        # ki = 2 reads h+1
    return s


def _pool_rows(b_tile, h_in):
    """0/1 row-selection matrices picking the even / odd rows of each 2x2-pool pair."""
    h_out = h_in // 2
    p = np.zeros((2, b_tile * h_out, b_tile * h_in), np.float32)
    for b in range(b_tile):
        for hh in range(h_out):
            p[0, b * h_out + hh, b * h_in + 2 * hh] = 1.0
            p[1, b * h_out + hh, b * h_in + 2 * hh + 1] = 1.0
    return p


def _linear_mats(w_lin, b_lin, b_tile, h_sp, w_sp, ch, out_pad=OUT_PAD):
    """Final flatten + linear.  PyTorch's NCHW flatten order (j = c*H*W + h*W + w)
    is baked into the weight rows; the per-image row selection is a 0/1 matmul.
    Output columns are zero-padded to `out_pad` lanes."""
    n_out = w_lin.shape[0]
    assert n_out <= out_pad
    rs = np.zeros((h_sp, b_tile, b_tile * h_sp), np.float32)
    for b in range(b_tile):
        for h in range(h_sp):
            rs[h, b, b * h_sp + h] = 1.0
    wl = np.zeros((h_sp, ch * w_sp, out_pad), np.float32)
    for h in range(h_sp):
        for w in range(w_sp):
            for c in range(ch):
                wl[h, ch * w + c, :n_out] = w_lin[:, c * h_sp * w_sp + h * w_sp + w]
    bl = np.zeros((1, out_pad), np.float32)
    bl[0, :n_out] = b_lin
    return rs, wl, bl


# ---------------------------------------------------------------------------
# Fused forward kernel
# ---------------------------------------------------------------------------

def _make_kernel(n_blocks, h_final, b_tile, out_pad):
    def kernel(*refs):
        f32 = jnp.float32
        x_ref, out_ref = refs[0], refs[-1]
        cur = x_ref[...].astype(f32)                      # (b_tile*H, W*Cin)
        r = 1
        for _ in range(n_blocks):
            s_ref, m_ref, b_ref, p_ref = refs[r:r + 4]
            r += 4
            # conv (+ folded BN) + relu: banded MXU matmuls; H shift/pad via 0/1 matmuls
            acc = jnp.dot(cur, m_ref[1], preferred_element_type=f32)
            for s_idx, ki in ((0, 0), (1, 2)):
                rows = jnp.dot(s_ref[s_idx], cur, preferred_element_type=f32)
                acc = acc + jnp.dot(rows, m_ref[ki], preferred_element_type=f32)
            act = jnp.maximum(acc + b_ref[...], 0.0)
            # 2x2/s2 max pool: W pairs are the two lane halves, H pairs via 0/1 matmuls
            half = act.shape[-1] // 2
            actw = jnp.maximum(act[:, :half], act[:, half:])
            cur = jnp.maximum(
                jnp.dot(p_ref[0], actw, preferred_element_type=f32),
                jnp.dot(p_ref[1], actw, preferred_element_type=f32))
        # flatten (order baked into wl) + linear, lane-padded output
        rs_ref, wl_ref, bl_ref = refs[r:r + 3]
        out = jnp.zeros((b_tile, out_pad), jnp.float32)
        for h in range(h_final):
            q = jnp.dot(rs_ref[h], cur, preferred_element_type=f32)
            out = out + jnp.dot(q, wl_ref[h], preferred_element_type=f32)
        out_ref[...] = (out + bl_ref[...]).astype(out_ref.dtype)

    return kernel


# ---------------------------------------------------------------------------
# Config parsing / weight preparation + pallas_call wrapper
# ---------------------------------------------------------------------------

def prepare_learner(config, vars_, vars_bn, in_shape, b_tile=None, eps=1e-5):
    """Fold inference BN, build all structured matrices, and pack the kernel inputs."""
    B, C0, H0, W0 = in_shape
    assert C0 == 1, "only single-channel input implemented"  # TODO(synk): C0 > 1
    if b_tile is None:
        b_tile = B
    assert B % b_tile == 0

    np_vars = [np.asarray(v, np.float32) for v in vars_]
    np_bn = [np.asarray(v, np.float32) for v in vars_bn]

    H, W, C = H0, W0, C0
    weights = []
    n_blocks = 0
    lin = None
    i = idx = bn_idx = 0
    while i < len(config):
        name, param, _ = config[i]
        if name == 'conv2d':
            cout, cin, kh, kw, st, pd = param
            assert (kh, kw, st, pd) == (3, 3, 1, 1), "only 3x3 / s1 / p1 convs"
            assert cin == C
            w, b = np_vars[idx], np_vars[idx + 1]; idx += 2
            assert config[i + 1][0] == 'bn' and config[i + 2][0] == 'relu'
            g, be = np_vars[idx], np_vars[idx + 1]; idx += 2
            rm, rv = np_bn[bn_idx], np_bn[bn_idx + 1]; bn_idx += 2
            assert config[i + 3][0] == 'max_pool2d'
            assert tuple(config[i + 3][1][:3]) == (2, 2, 0), "only 2x2/s2/p0 pool"
            assert H % 2 == 0 and W % 2 == 0
            scale = g / np.sqrt(rv + eps)
            w_eff = (w * scale[:, None, None, None]).astype(np.float32)
            b_eff = ((b - rm) * scale + be).astype(np.float32)
            m, brow = _conv_band_and_bias(w_eff, b_eff, W)
            weights += [jnp.asarray(_row_shift(b_tile, H)),
                        jnp.asarray(m), jnp.asarray(brow),
                        jnp.asarray(_pool_rows(b_tile, H))]
            C, H, W = cout, H // 2, W // 2
            n_blocks += 1
            i += 4
        elif name == 'flatten':
            i += 1
        elif name == 'linear':
            n_cls, cin = param
            assert cin == C * H * W
            lin = (n_cls, np_vars[idx], np_vars[idx + 1]); idx += 2
            i += 1
        else:
            # TODO(synk): convt2d / cat / rep / residual / upsample / avg_pool2d /
            # tanh / sigmoid / leakyrelu / cosine-linear of the general Learner
            # config are not exercised by this config and are not implemented.
            raise NotImplementedError(name)
    assert idx == len(np_vars) and bn_idx == len(np_bn)
    assert n_blocks >= 1 and lin is not None

    n_cls, w_lin, b_lin = lin
    rs, wl, bl = _linear_mats(w_lin, b_lin, b_tile, H, W, C)
    weights += [jnp.asarray(rs), jnp.asarray(wl), jnp.asarray(bl)]

    meta = dict(B=B, b_tile=b_tile, H0=H0, W0=W0, n_blocks=n_blocks,
                h_final=H, n_classes=n_cls)
    return tuple(weights), meta


def learner_forward(x_nchw, weights, meta):
    """Mirrors Learner.forward (bn_training=False) as one fused Pallas TPU kernel."""
    B, b_tile = meta['B'], meta['b_tile']
    H0, W0 = meta['H0'], meta['W0']
    # NCHW with C=1 -> (B*H, W): rows are (b, h)-major, W sits in the lane dim.
    x2d = x_nchw.astype(jnp.float32).reshape(B * H0, W0)

    kernel = _make_kernel(meta['n_blocks'], meta['h_final'], b_tile, OUT_PAD)
    w_specs = [pl.BlockSpec(w.shape, lambda i, nd=w.ndim: (0,) * nd) for w in weights]
    out = pl.pallas_call(
        kernel,
        out_shape=jax.ShapeDtypeStruct((B, OUT_PAD), jnp.float32),
        grid=(B // b_tile,),
        in_specs=[pl.BlockSpec((b_tile * H0, W0), lambda i: (i, 0))] + w_specs,
        out_specs=pl.BlockSpec((b_tile, OUT_PAD), lambda i: (i, 0)),
        compiler_params=pltpu.CompilerParams(dimension_semantics=("parallel",)),
    )(x2d, *weights)
    return out[:, :meta['n_classes']]


# ---------------------------------------------------------------------------
# Config + deterministic parameter init (matches Learner.__init__ structure)
# ---------------------------------------------------------------------------

CONFIG = [
    ('conv2d', [8, 1, 3, 3, 1, 1], ''),
    ('bn', [8], ''),
    ('relu', [True], ''),
    ('max_pool2d', [2, 2, 0], ''),
    ('conv2d', [8, 8, 3, 3, 1, 1], ''),
    ('bn', [8], ''),
    ('relu', [True], ''),
    ('max_pool2d', [2, 2, 0], ''),
    ('flatten', [], ''),
    ('linear', [5, 8 * 4 * 4], ''),
]


def init_params(config, key):
    """Deterministic kaiming-normal conv/linear weights, zero bias, unit BN."""
    vars_, vars_bn = [], []
    for name, param, _ in config:
        if name == 'conv2d':
            cout, cin, kh, kw, *_ = param
            key, sub = jax.random.split(key)
            std = math.sqrt(2.0) / math.sqrt(cin * kh * kw)
            vars_.append(std * jax.random.normal(sub, (cout, cin, kh, kw), jnp.float32))
            vars_.append(jnp.zeros((cout,), jnp.float32))
        elif name == 'linear':
            cout, cin = param
            key, sub = jax.random.split(key)
            std = math.sqrt(2.0) / math.sqrt(cin)
            vars_.append(std * jax.random.normal(sub, (cout, cin), jnp.float32))
            vars_.append(jnp.zeros((cout,), jnp.float32))
        elif name == 'bn':
            c = param[0]
            vars_.append(jnp.ones((c,), jnp.float32))      # gamma
            vars_.append(jnp.zeros((c,), jnp.float32))     # beta
            vars_bn.append(jnp.zeros((c,), jnp.float32))   # running mean
            vars_bn.append(jnp.ones((c,), jnp.float32))    # running var
    return vars_, vars_bn


# ---------------------------------------------------------------------------
# Pure-JAX reference (sanity check only)
# ---------------------------------------------------------------------------

def reference_forward(x_nchw, config, vars_, vars_bn, eps=1e-5):
    x = x_nchw
    idx = bn_idx = 0
    for name, param, _ in config:
        if name == 'conv2d':
            w, b = vars_[idx], vars_[idx + 1]
            x = lax.conv_general_dilated(
                x, w, window_strides=(param[4], param[4]),
                padding=[(param[5], param[5])] * 2,
                dimension_numbers=('NCHW', 'OIHW', 'NCHW'),
                precision=lax.Precision.HIGHEST)
            x = x + b[None, :, None, None]
            idx += 2
        elif name == 'bn':
            g, be = vars_[idx], vars_[idx + 1]
            rm, rv = vars_bn[bn_idx], vars_bn[bn_idx + 1]
            x = (x - rm[None, :, None, None]) / jnp.sqrt(rv[None, :, None, None] + eps)
            x = x * g[None, :, None, None] + be[None, :, None, None]
            idx += 2
            bn_idx += 2
        elif name == 'relu':
            x = jnp.maximum(x, 0.0)
        elif name == 'max_pool2d':
            x = lax.reduce_window(x, -jnp.inf, lax.max,
                                  (1, 1, 2, 2), (1, 1, 2, 2), 'VALID')
        elif name == 'flatten':
            x = x.reshape(x.shape[0], -1)
        elif name == 'linear':
            w, b = vars_[idx], vars_[idx + 1]
            x = jnp.dot(x, w.T, precision=lax.Precision.HIGHEST) + b
            idx += 2
    return x


if __name__ == "__main__":
    key = jax.random.PRNGKey(0)
    key, xkey = jax.random.split(key)
    x = jax.random.normal(xkey, (2, 1, 16, 16), jnp.float32)   # NCHW like PyTorch

    vars_, vars_bn = init_params(CONFIG, key)
    weights, meta = prepare_learner(CONFIG, vars_, vars_bn, x.shape)

    fwd = jax.jit(lambda xx, ws: learner_forward(xx, ws, meta))
    out = jax.block_until_ready(fwd(x, weights))

    ref = reference_forward(x, CONFIG, vars_, vars_bn)
    assert out.shape == (2, 5), out.shape
    err = float(jnp.max(jnp.abs(out - ref)))
    assert jnp.allclose(out, ref, atol=2e-3, rtol=2e-3), err

    print("KERNEL_OK")
</pallas_src>

<mosaic_0001>
module attributes {stable_mosaic.version = 11 : i64} {
  func.func @kernel(%arg0: i32, %arg1: memref<32x16xf32, #tpu.memory_space<vmem>>, %arg2: memref<2x32x32xf32, #tpu.memory_space<vmem>>, %arg3: memref<3x16x128xf32, #tpu.memory_space<vmem>>, %arg4: memref<1x128xf32, #tpu.memory_space<vmem>>, %arg5: memref<2x16x32xf32, #tpu.memory_space<vmem>>, %arg6: memref<2x16x16xf32, #tpu.memory_space<vmem>>, %arg7: memref<3x64x64xf32, #tpu.memory_space<vmem>>, %arg8: memref<1x64xf32, #tpu.memory_space<vmem>>, %arg9: memref<2x8x16xf32, #tpu.memory_space<vmem>>, %arg10: memref<4x2x8xf32, #tpu.memory_space<vmem>>, %arg11: memref<4x32x128xf32, #tpu.memory_space<vmem>>, %arg12: memref<1x128xf32, #tpu.memory_space<vmem>>, %arg13: memref<2x128xf32, #tpu.memory_space<vmem>>) attributes {dimension_semantics = [#tpu.dimension_semantics<parallel>], iteration_bounds = array<i64: 1>, scalar_prefetch = 0 : i64, scratch_operands = 0 : i64, tpu.core_type = #tpu.core_type<tc>, window_params = [{transform_indices = @transform_0, window_bounds = array<i64: 32, 16>}, {pipeline_mode = #tpu.pipeline_mode<synchronous>, transform_indices = @transform_1, window_bounds = array<i64: 2, 32, 32>}, {pipeline_mode = #tpu.pipeline_mode<synchronous>, transform_indices = @transform_2, window_bounds = array<i64: 3, 16, 128>}, {pipeline_mode = #tpu.pipeline_mode<synchronous>, transform_indices = @transform_3, window_bounds = array<i64: 1, 128>}, {pipeline_mode = #tpu.pipeline_mode<synchronous>, transform_indices = @transform_4, window_bounds = array<i64: 2, 16, 32>}, {pipeline_mode = #tpu.pipeline_mode<synchronous>, transform_indices = @transform_5, window_bounds = array<i64: 2, 16, 16>}, {pipeline_mode = #tpu.pipeline_mode<synchronous>, transform_indices = @transform_6, window_bounds = array<i64: 3, 64, 64>}, {pipeline_mode = #tpu.pipeline_mode<synchronous>, transform_indices = @transform_7, window_bounds = array<i64: 1, 64>}, {pipeline_mode = #tpu.pipeline_mode<synchronous>, transform_indices = @transform_8, window_bounds = array<i64: 2, 8, 16>}, {pipeline_mode = #tpu.pipeline_mode<synchronous>, transform_indices = @transform_9, window_bounds = array<i64: 4, 2, 8>}, {pipeline_mode = #tpu.pipeline_mode<synchronous>, transform_indices = @transform_10, window_bounds = array<i64: 4, 32, 128>}, {pipeline_mode = #tpu.pipeline_mode<synchronous>, transform_indices = @transform_11, window_bounds = array<i64: 1, 128>}, {transform_indices = @transform_12, window_bounds = array<i64: 2, 128>}]} {
    %c0 = arith.constant 0 : index
    %c0_0 = arith.constant 0 : index
    %0 = vector.load %arg1[%c0, %c0_0] : memref<32x16xf32, #tpu.memory_space<vmem>>, vector<32x16xf32>
    %c1 = arith.constant 1 : index
    %c0_1 = arith.constant 0 : index
    %c0_2 = arith.constant 0 : index
    %1 = vector.load %arg3[%c1, %c0_1, %c0_2] : memref<3x16x128xf32, #tpu.memory_space<vmem>>, vector<1x16x128xf32>
    %2 = vector.shape_cast %1 : vector<1x16x128xf32> to vector<16x128xf32>
    %cst = arith.constant dense<0.000000e+00> : vector<32x128xf32>
    %3 = tpu.matmul %0, %2, %cst {dimension_numbers = #tpu.dot_dimension_numbers<[1], [0], [0], [1], [0, 0, 1, 1], [], []>} : vector<32x16xf32>, vector<16x128xf32>, vector<32x128xf32> -> vector<32x128xf32>
    %c0_3 = arith.constant 0 : index
    %c0_4 = arith.constant 0 : index
    %c0_5 = arith.constant 0 : index
    %4 = vector.load %arg2[%c0_3, %c0_4, %c0_5] : memref<2x32x32xf32, #tpu.memory_space<vmem>>, vector<1x32x32xf32>
    %5 = vector.shape_cast %4 : vector<1x32x32xf32> to vector<32x32xf32>
    %cst_6 = arith.constant dense<0.000000e+00> : vector<32x16xf32>
    %6 = tpu.matmul %5, %0, %cst_6 {dimension_numbers = #tpu.dot_dimension_numbers<[1], [0], [0], [1], [0, 0, 1, 1], [], []>} : vector<32x32xf32>, vector<32x16xf32>, vector<32x16xf32> -> vector<32x16xf32>
    %c0_7 = arith.constant 0 : index
    %c0_8 = arith.constant 0 : index
    %c0_9 = arith.constant 0 : index
    %7 = vector.load %arg3[%c0_7, %c0_8, %c0_9] : memref<3x16x128xf32, #tpu.memory_space<vmem>>, vector<1x16x128xf32>
    %8 = vector.shape_cast %7 : vector<1x16x128xf32> to vector<16x128xf32>
    %cst_10 = arith.constant dense<0.000000e+00> : vector<32x128xf32>
    %9 = tpu.matmul %6, %8, %cst_10 {dimension_numbers = #tpu.dot_dimension_numbers<[1], [0], [0], [1], [0, 0, 1, 1], [], []>} : vector<32x16xf32>, vector<16x128xf32>, vector<32x128xf32> -> vector<32x128xf32>
    %10 = arith.addf %3, %9 : vector<32x128xf32>
    %c1_11 = arith.constant 1 : index
    %c0_12 = arith.constant 0 : index
    %c0_13 = arith.constant 0 : index
    %11 = vector.load %arg2[%c1_11, %c0_12, %c0_13] : memref<2x32x32xf32, #tpu.memory_space<vmem>>, vector<1x32x32xf32>
    %12 = vector.shape_cast %11 : vector<1x32x32xf32> to vector<32x32xf32>
    %cst_14 = arith.constant dense<0.000000e+00> : vector<32x16xf32>
    %13 = tpu.matmul %12, %0, %cst_14 {dimension_numbers = #tpu.dot_dimension_numbers<[1], [0], [0], [1], [0, 0, 1, 1], [], []>} : vector<32x32xf32>, vector<32x16xf32>, vector<32x16xf32> -> vector<32x16xf32>
    %c2 = arith.constant 2 : index
    %c0_15 = arith.constant 0 : index
    %c0_16 = arith.constant 0 : index
    %14 = vector.load %arg3[%c2, %c0_15, %c0_16] : memref<3x16x128xf32, #tpu.memory_space<vmem>>, vector<1x16x128xf32>
    %15 = vector.shape_cast %14 : vector<1x16x128xf32> to vector<16x128xf32>
    %cst_17 = arith.constant dense<0.000000e+00> : vector<32x128xf32>
    %16 = tpu.matmul %13, %15, %cst_17 {dimension_numbers = #tpu.dot_dimension_numbers<[1], [0], [0], [1], [0, 0, 1, 1], [], []>} : vector<32x16xf32>, vector<16x128xf32>, vector<32x128xf32> -> vector<32x128xf32>
    %17 = arith.addf %10, %16 : vector<32x128xf32>
    %c0_18 = arith.constant 0 : index
    %c0_19 = arith.constant 0 : index
    %18 = vector.load %arg4[%c0_18, %c0_19] : memref<1x128xf32, #tpu.memory_space<vmem>>, vector<1x128xf32>
    %19 = vector.broadcast %18 : vector<1x128xf32> to vector<32x128xf32>
    %20 = arith.addf %17, %19 : vector<32x128xf32>
    %cst_20 = arith.constant 0.000000e+00 : f32
    %21 = vector.broadcast %cst_20 : f32 to vector<32x128xf32>
    %22 = arith.maximumf %20, %21 : vector<32x128xf32>
    %23 = vector.extract_strided_slice %22 {offsets = [0, 0], sizes = [32, 64], strides = [1, 1]} : vector<32x128xf32> to vector<32x64xf32>
    %24 = vector.extract_strided_slice %22 {offsets = [0, 64], sizes = [32, 64], strides = [1, 1]} : vector<32x128xf32> to vector<32x64xf32>
    %25 = arith.maximumf %23, %24 : vector<32x64xf32>
    %c0_21 = arith.constant 0 : index
    %c0_22 = arith.constant 0 : index
    %c0_23 = arith.constant 0 : index
    %26 = vector.load %arg5[%c0_21, %c0_22, %c0_23] : memref<2x16x32xf32, #tpu.memory_space<vmem>>, vector<1x16x32xf32>
    %27 = vector.shape_cast %26 : vector<1x16x32xf32> to vector<16x32xf32>
    %cst_24 = arith.constant dense<0.000000e+00> : vector<16x64xf32>
    %28 = tpu.matmul %27, %25, %cst_24 {dimension_numbers = #tpu.dot_dimension_numbers<[1], [0], [0], [1], [0, 0, 1, 1], [], []>} : vector<16x32xf32>, vector<32x64xf32>, vector<16x64xf32> -> vector<16x64xf32>
    %c1_25 = arith.constant 1 : index
    %c0_26 = arith.constant 0 : index
    %c0_27 = arith.constant 0 : index
    %29 = vector.load %arg5[%c1_25, %c0_26, %c0_27] : memref<2x16x32xf32, #tpu.memory_space<vmem>>, vector<1x16x32xf32>
    %30 = vector.shape_cast %29 : vector<1x16x32xf32> to vector<16x32xf32>
    %cst_28 = arith.constant dense<0.000000e+00> : vector<16x64xf32>
    %31 = tpu.matmul %30, %25, %cst_28 {dimension_numbers = #tpu.dot_dimension_numbers<[1], [0], [0], [1], [0, 0, 1, 1], [], []>} : vector<16x32xf32>, vector<32x64xf32>, vector<16x64xf32> -> vector<16x64xf32>
    %32 = arith.maximumf %28, %31 : vector<16x64xf32>
    %c1_29 = arith.constant 1 : index
    %c0_30 = arith.constant 0 : index
    %c0_31 = arith.constant 0 : index
    %33 = vector.load %arg7[%c1_29, %c0_30, %c0_31] : memref<3x64x64xf32, #tpu.memory_space<vmem>>, vector<1x64x64xf32>
    %34 = vector.shape_cast %33 : vector<1x64x64xf32> to vector<64x64xf32>
    %cst_32 = arith.constant dense<0.000000e+00> : vector<16x64xf32>
    %35 = tpu.matmul %32, %34, %cst_32 {dimension_numbers = #tpu.dot_dimension_numbers<[1], [0], [0], [1], [0, 0, 1, 1], [], []>} : vector<16x64xf32>, vector<64x64xf32>, vector<16x64xf32> -> vector<16x64xf32>
    %c0_33 = arith.constant 0 : index
    %c0_34 = arith.constant 0 : index
    %c0_35 = arith.constant 0 : index
    %36 = vector.load %arg6[%c0_33, %c0_34, %c0_35] : memref<2x16x16xf32, #tpu.memory_space<vmem>>, vector<1x16x16xf32>
    %37 = vector.shape_cast %36 : vector<1x16x16xf32> to vector<16x16xf32>
    %cst_36 = arith.constant dense<0.000000e+00> : vector<16x64xf32>
    %38 = tpu.matmul %37, %32, %cst_36 {dimension_numbers = #tpu.dot_dimension_numbers<[1], [0], [0], [1], [0, 0, 1, 1], [], []>} : vector<16x16xf32>, vector<16x64xf32>, vector<16x64xf32> -> vector<16x64xf32>
    %c0_37 = arith.constant 0 : index
    %c0_38 = arith.constant 0 : index
    %c0_39 = arith.constant 0 : index
    %39 = vector.load %arg7[%c0_37, %c0_38, %c0_39] : memref<3x64x64xf32, #tpu.memory_space<vmem>>, vector<1x64x64xf32>
    %40 = vector.shape_cast %39 : vector<1x64x64xf32> to vector<64x64xf32>
    %cst_40 = arith.constant dense<0.000000e+00> : vector<16x64xf32>
    %41 = tpu.matmul %38, %40, %cst_40 {dimension_numbers = #tpu.dot_dimension_numbers<[1], [0], [0], [1], [0, 0, 1, 1], [], []>} : vector<16x64xf32>, vector<64x64xf32>, vector<16x64xf32> -> vector<16x64xf32>
    %42 = arith.addf %35, %41 : vector<16x64xf32>
    %c1_41 = arith.constant 1 : index
    %c0_42 = arith.constant 0 : index
    %c0_43 = arith.constant 0 : index
    %43 = vector.load %arg6[%c1_41, %c0_42, %c0_43] : memref<2x16x16xf32, #tpu.memory_space<vmem>>, vector<1x16x16xf32>
    %44 = vector.shape_cast %43 : vector<1x16x16xf32> to vector<16x16xf32>
    %cst_44 = arith.constant dense<0.000000e+00> : vector<16x64xf32>
    %45 = tpu.matmul %44, %32, %cst_44 {dimension_numbers = #tpu.dot_dimension_numbers<[1], [0], [0], [1], [0, 0, 1, 1], [], []>} : vector<16x16xf32>, vector<16x64xf32>, vector<16x64xf32> -> vector<16x64xf32>
    %c2_45 = arith.constant 2 : index
    %c0_46 = arith.constant 0 : index
    %c0_47 = arith.constant 0 : index
    %46 = vector.load %arg7[%c2_45, %c0_46, %c0_47] : memref<3x64x64xf32, #tpu.memory_space<vmem>>, vector<1x64x64xf32>
    %47 = vector.shape_cast %46 : vector<1x64x64xf32> to vector<64x64xf32>
    %cst_48 = arith.constant dense<0.000000e+00> : vector<16x64xf32>
    %48 = tpu.matmul %45, %47, %cst_48 {dimension_numbers = #tpu.dot_dimension_numbers<[1], [0], [0], [1], [0, 0, 1, 1], [], []>} : vector<16x64xf32>, vector<64x64xf32>, vector<16x64xf32> -> vector<16x64xf32>
    %49 = arith.addf %42, %48 : vector<16x64xf32>
    %c0_49 = arith.constant 0 : index
    %c0_50 = arith.constant 0 : index
    %50 = vector.load %arg8[%c0_49, %c0_50] : memref<1x64xf32, #tpu.memory_space<vmem>>, vector<1x64xf32>
    %51 = vector.broadcast %50 : vector<1x64xf32> to vector<16x64xf32>
    %52 = arith.addf %49, %51 : vector<16x64xf32>
    %cst_51 = arith.constant 0.000000e+00 : f32
    %53 = vector.broadcast %cst_51 : f32 to vector<16x64xf32>
    %54 = arith.maximumf %52, %53 : vector<16x64xf32>
    %55 = vector.extract_strided_slice %54 {offsets = [0, 0], sizes = [16, 32], strides = [1, 1]} : vector<16x64xf32> to vector<16x32xf32>
    %56 = vector.extract_strided_slice %54 {offsets = [0, 32], sizes = [16, 32], strides = [1, 1]} : vector<16x64xf32> to vector<16x32xf32>
    %57 = arith.maximumf %55, %56 : vector<16x32xf32>
    %c0_52 = arith.constant 0 : index
    %c0_53 = arith.constant 0 : index
    %c0_54 = arith.constant 0 : index
    %58 = vector.load %arg9[%c0_52, %c0_53, %c0_54] : memref<2x8x16xf32, #tpu.memory_space<vmem>>, vector<1x8x16xf32>
    %59 = vector.shape_cast %58 : vector<1x8x16xf32> to vector<8x16xf32>
    %cst_55 = arith.constant dense<0.000000e+00> : vector<8x32xf32>
    %60 = tpu.matmul %59, %57, %cst_55 {dimension_numbers = #tpu.dot_dimension_numbers<[1], [0], [0], [1], [0, 0, 1, 1], [], []>} : vector<8x16xf32>, vector<16x32xf32>, vector<8x32xf32> -> vector<8x32xf32>
    %c1_56 = arith.constant 1 : index
    %c0_57 = arith.constant 0 : index
    %c0_58 = arith.constant 0 : index
    %61 = vector.load %arg9[%c1_56, %c0_57, %c0_58] : memref<2x8x16xf32, #tpu.memory_space<vmem>>, vector<1x8x16xf32>
    %62 = vector.shape_cast %61 : vector<1x8x16xf32> to vector<8x16xf32>
    %cst_59 = arith.constant dense<0.000000e+00> : vector<8x32xf32>
    %63 = tpu.matmul %62, %57, %cst_59 {dimension_numbers = #tpu.dot_dimension_numbers<[1], [0], [0], [1], [0, 0, 1, 1], [], []>} : vector<8x16xf32>, vector<16x32xf32>, vector<8x32xf32> -> vector<8x32xf32>
    %64 = arith.maximumf %60, %63 : vector<8x32xf32>
    %cst_60 = arith.constant 0.000000e+00 : f32
    %65 = vector.broadcast %cst_60 : f32 to vector<2x128xf32>
    %c0_61 = arith.constant 0 : index
    %c0_62 = arith.constant 0 : index
    %c0_63 = arith.constant 0 : index
    %66 = vector.load %arg10[%c0_61, %c0_62, %c0_63] : memref<4x2x8xf32, #tpu.memory_space<vmem>>, vector<1x2x8xf32>
    %67 = vector.shape_cast %66 : vector<1x2x8xf32> to vector<2x8xf32>
    %cst_64 = arith.constant dense<0.000000e+00> : vector<2x32xf32>
    %68 = tpu.matmul %67, %64, %cst_64 {dimension_numbers = #tpu.dot_dimension_numbers<[1], [0], [0], [1], [0, 0, 1, 1], [], []>} : vector<2x8xf32>, vector<8x32xf32>, vector<2x32xf32> -> vector<2x32xf32>
    %c0_65 = arith.constant 0 : index
    %c0_66 = arith.constant 0 : index
    %c0_67 = arith.constant 0 : index
    %69 = vector.load %arg11[%c0_65, %c0_66, %c0_67] : memref<4x32x128xf32, #tpu.memory_space<vmem>>, vector<1x32x128xf32>
    %70 = vector.shape_cast %69 : vector<1x32x128xf32> to vector<32x128xf32>
    %cst_68 = arith.constant dense<0.000000e+00> : vector<2x128xf32>
    %71 = tpu.matmul %68, %70, %cst_68 {dimension_numbers = #tpu.dot_dimension_numbers<[1], [0], [0], [1], [0, 0, 1, 1], [], []>} : vector<2x32xf32>, vector<32x128xf32>, vector<2x128xf32> -> vector<2x128xf32>
    %72 = arith.addf %65, %71 : vector<2x128xf32>
    %c1_69 = arith.constant 1 : index
    %c0_70 = arith.constant 0 : index
    %c0_71 = arith.constant 0 : index
    %73 = vector.load %arg10[%c1_69, %c0_70, %c0_71] : memref<4x2x8xf32, #tpu.memory_space<vmem>>, vector<1x2x8xf32>
    %74 = vector.shape_cast %73 : vector<1x2x8xf32> to vector<2x8xf32>
    %cst_72 = arith.constant dense<0.000000e+00> : vector<2x32xf32>
    %75 = tpu.matmul %74, %64, %cst_72 {dimension_numbers = #tpu.dot_dimension_numbers<[1], [0], [0], [1], [0, 0, 1, 1], [], []>} : vector<2x8xf32>, vector<8x32xf32>, vector<2x32xf32> -> vector<2x32xf32>
    %c1_73 = arith.constant 1 : index
    %c0_74 = arith.constant 0 : index
    %c0_75 = arith.constant 0 : index
    %76 = vector.load %arg11[%c1_73, %c0_74, %c0_75] : memref<4x32x128xf32, #tpu.memory_space<vmem>>, vector<1x32x128xf32>
    %77 = vector.shape_cast %76 : vector<1x32x128xf32> to vector<32x128xf32>
    %cst_76 = arith.constant dense<0.000000e+00> : vector<2x128xf32>
    %78 = tpu.matmul %75, %77, %cst_76 {dimension_numbers = #tpu.dot_dimension_numbers<[1], [0], [0], [1], [0, 0, 1, 1], [], []>} : vector<2x32xf32>, vector<32x128xf32>, vector<2x128xf32> -> vector<2x128xf32>
    %79 = arith.addf %72, %78 : vector<2x128xf32>
    %c2_77 = arith.constant 2 : index
    %c0_78 = arith.constant 0 : index
    %c0_79 = arith.constant 0 : index
    %80 = vector.load %arg10[%c2_77, %c0_78, %c0_79] : memref<4x2x8xf32, #tpu.memory_space<vmem>>, vector<1x2x8xf32>
    %81 = vector.shape_cast %80 : vector<1x2x8xf32> to vector<2x8xf32>
    %cst_80 = arith.constant dense<0.000000e+00> : vector<2x32xf32>
    %82 = tpu.matmul %81, %64, %cst_80 {dimension_numbers = #tpu.dot_dimension_numbers<[1], [0], [0], [1], [0, 0, 1, 1], [], []>} : vector<2x8xf32>, vector<8x32xf32>, vector<2x32xf32> -> vector<2x32xf32>
    %c2_81 = arith.constant 2 : index
    %c0_82 = arith.constant 0 : index
    %c0_83 = arith.constant 0 : index
    %83 = vector.load %arg11[%c2_81, %c0_82, %c0_83] : memref<4x32x128xf32, #tpu.memory_space<vmem>>, vector<1x32x128xf32>
    %84 = vector.shape_cast %83 : vector<1x32x128xf32> to vector<32x128xf32>
    %cst_84 = arith.constant dense<0.000000e+00> : vector<2x128xf32>
    %85 = tpu.matmul %82, %84, %cst_84 {dimension_numbers = #tpu.dot_dimension_numbers<[1], [0], [0], [1], [0, 0, 1, 1], [], []>} : vector<2x32xf32>, vector<32x128xf32>, vector<2x128xf32> -> vector<2x128xf32>
    %86 = arith.addf %79, %85 : vector<2x128xf32>
    %c3 = arith.constant 3 : index
    %c0_85 = arith.constant 0 : index
    %c0_86 = arith.constant 0 : index
    %87 = vector.load %arg10[%c3, %c0_85, %c0_86] : memref<4x2x8xf32, #tpu.memory_space<vmem>>, vector<1x2x8xf32>
    %88 = vector.shape_cast %87 : vector<1x2x8xf32> to vector<2x8xf32>
    %cst_87 = arith.constant dense<0.000000e+00> : vector<2x32xf32>
    %89 = tpu.matmul %88, %64, %cst_87 {dimension_numbers = #tpu.dot_dimension_numbers<[1], [0], [0], [1], [0, 0, 1, 1], [], []>} : vector<2x8xf32>, vector<8x32xf32>, vector<2x32xf32> -> vector<2x32xf32>
    %c3_88 = arith.constant 3 : index
    %c0_89 = arith.constant 0 : index
    %c0_90 = arith.constant 0 : index
    %90 = vector.load %arg11[%c3_88, %c0_89, %c0_90] : memref<4x32x128xf32, #tpu.memory_space<vmem>>, vector<1x32x128xf32>
    %91 = vector.shape_cast %90 : vector<1x32x128xf32> to vector<32x128xf32>
    %cst_91 = arith.constant dense<0.000000e+00> : vector<2x128xf32>
    %92 = tpu.matmul %89, %91, %cst_91 {dimension_numbers = #tpu.dot_dimension_numbers<[1], [0], [0], [1], [0, 0, 1, 1], [], []>} : vector<2x32xf32>, vector<32x128xf32>, vector<2x128xf32> -> vector<2x128xf32>
    %93 = arith.addf %86, %92 : vector<2x128xf32>
    %c0_92 = arith.constant 0 : index
    %c0_93 = arith.constant 0 : index
    %94 = vector.load %arg12[%c0_92, %c0_93] : memref<1x128xf32, #tpu.memory_space<vmem>>, vector<1x128xf32>
    %95 = vector.broadcast %94 : vector<1x128xf32> to vector<2x128xf32>
    %96 = arith.addf %93, %95 : vector<2x128xf32>
    %c0_94 = arith.constant 0 : index
    %c0_95 = arith.constant 0 : index
    %97 = vector.load %arg13[%c0_94, %c0_95] : memref<2x128xf32, #tpu.memory_space<vmem>>, vector<2x128xf32>
    tpu.vector_store %arg13[%c0_94, %c0_95], %96 {strides = array<i32>} : memref<2x128xf32, #tpu.memory_space<vmem>>, vector<2x128xf32>,
    return
  }
  func.func @transform_0(%arg0: i32) -> (i32, i32) {
    %c0_i32 = arith.constant 0 : i32
    %c0_i32_0 = arith.constant 0 : i32
    return %arg0, %c0_i32 : i32, i32
  }
  func.func @transform_1(%arg0: i32) -> (i32, i32, i32) {
    %c0_i32 = arith.constant 0 : i32
    %c0_i32_0 = arith.constant 0 : i32
    %c0_i32_1 = arith.constant 0 : i32
    %c0_i32_2 = arith.constant 0 : i32
    return %c0_i32, %c0_i32_0, %c0_i32_1 : i32, i32, i32
  }
  func.func @transform_2(%arg0: i32) -> (i32, i32, i32) {
    %c0_i32 = arith.constant 0 : i32
    %c0_i32_0 = arith.constant 0 : i32
    %c0_i32_1 = arith.constant 0 : i32
    %c0_i32_2 = arith.constant 0 : i32
    return %c0_i32, %c0_i32_0, %c0_i32_1 : i32, i32, i32
  }
  func.func @transform_3(%arg0: i32) -> (i32, i32) {
    %c0_i32 = arith.constant 0 : i32
    %c0_i32_0 = arith.constant 0 : i32
    %c0_i32_1 = arith.constant 0 : i32
    return %c0_i32, %c0_i32_0 : i32, i32
  }
  func.func @transform_4(%arg0: i32) -> (i32, i32, i32) {
    %c0_i32 = arith.constant 0 : i32
    %c0_i32_0 = arith.constant 0 : i32
    %c0_i32_1 = arith.constant 0 : i32
    %c0_i32_2 = arith.constant 0 : i32
    return %c0_i32, %c0_i32_0, %c0_i32_1 : i32, i32, i32
  }
  func.func @transform_5(%arg0: i32) -> (i32, i32, i32) {
    %c0_i32 = arith.constant 0 : i32
    %c0_i32_0 = arith.constant 0 : i32
    %c0_i32_1 = arith.constant 0 : i32
    %c0_i32_2 = arith.constant 0 : i32
    return %c0_i32, %c0_i32_0, %c0_i32_1 : i32, i32, i32
  }
  func.func @transform_6(%arg0: i32) -> (i32, i32, i32) {
    %c0_i32 = arith.constant 0 : i32
    %c0_i32_0 = arith.constant 0 : i32
    %c0_i32_1 = arith.constant 0 : i32
    %c0_i32_2 = arith.constant 0 : i32
    return %c0_i32, %c0_i32_0, %c0_i32_1 : i32, i32, i32
  }
  func.func @transform_7(%arg0: i32) -> (i32, i32) {
    %c0_i32 = arith.constant 0 : i32
    %c0_i32_0 = arith.constant 0 : i32
    %c0_i32_1 = arith.constant 0 : i32
    return %c0_i32, %c0_i32_0 : i32, i32
  }
  func.func @transform_8(%arg0: i32) -> (i32, i32, i32) {
    %c0_i32 = arith.constant 0 : i32
    %c0_i32_0 = arith.constant 0 : i32
    %c0_i32_1 = arith.constant 0 : i32
    %c0_i32_2 = arith.constant 0 : i32
    return %c0_i32, %c0_i32_0, %c0_i32_1 : i32, i32, i32
  }
  func.func @transform_9(%arg0: i32) -> (i32, i32, i32) {
    %c0_i32 = arith.constant 0 : i32
    %c0_i32_0 = arith.constant 0 : i32
    %c0_i32_1 = arith.constant 0 : i32
    %c0_i32_2 = arith.constant 0 : i32
    return %c0_i32, %c0_i32_0, %c0_i32_1 : i32, i32, i32
  }
  func.func @transform_10(%arg0: i32) -> (i32, i32, i32) {
    %c0_i32 = arith.constant 0 : i32
    %c0_i32_0 = arith.constant 0 : i32
    %c0_i32_1 = arith.constant 0 : i32
    %c0_i32_2 = arith.constant 0 : i32
    return %c0_i32, %c0_i32_0, %c0_i32_1 : i32, i32, i32
  }
  func.func @transform_11(%arg0: i32) -> (i32, i32) {
    %c0_i32 = arith.constant 0 : i32
    %c0_i32_0 = arith.constant 0 : i32
    %c0_i32_1 = arith.constant 0 : i32
    return %c0_i32, %c0_i32_0 : i32, i32
  }
  func.func @transform_12(%arg0: i32) -> (i32, i32) {
    %c0_i32 = arith.constant 0 : i32
    %c0_i32_0 = arith.constant 0 : i32
    return %arg0, %c0_i32 : i32, i32
  }
}

</mosaic_0001>

<llo_original>
// kernel: _lambda_.1
$region0: #{_lambda_.1}
  #allocation0 [shape = 'u32[]', space=smem, size = 0x4, offset = 0x4, fixed_abs, tag = 'smem constant byte address 0x4 - core index']
  #allocation1 [shape = 'u32[144,128]{1,0:T(1,128)}', space=vmem, size = 0x12000, scoped, tag = 'internal scratch']
  %s0 = inlined_call_operand.hbm [shape: f32[32,16], index: 0, kind: input, shape index: {}]
  %s1 = inlined_call_operand.hbm [shape: f32[2,32,32], index: 1, kind: input, shape index: {}]
  %s2 = inlined_call_operand.hbm [shape: f32[3,16,128], index: 2, kind: input, shape index: {}]
  %s3 = inlined_call_operand.vmem [shape: f32[1,128], index: 3, kind: input, shape index: {}]
  %s4 = inlined_call_operand.hbm [shape: f32[2,16,32], index: 4, kind: input, shape index: {}]
  %s5 = inlined_call_operand.hbm [shape: f32[2,16,16], index: 5, kind: input, shape index: {}]
  %s6 = inlined_call_operand.hbm [shape: f32[3,64,64], index: 6, kind: input, shape index: {}]
  %s7 = inlined_call_operand.vmem [shape: f32[1,64], index: 7, kind: input, shape index: {}]
  %s8 = inlined_call_operand.vmem [shape: f32[2,8,16], index: 8, kind: input, shape index: {}]
  %s9 = inlined_call_operand.vmem [shape: f32[4,2,8], index: 9, kind: input, shape index: {}]
  %s10 = inlined_call_operand.hbm [shape: f32[4,32,128], index: 10, kind: input, shape index: {}]
  %s11 = inlined_call_operand.vmem [shape: f32[1,128], index: 11, kind: input, shape index: {}]
  %s12 = inlined_call_operand.hbm [shape: f32[2,128], index: 12, kind: output, shape index: {}]
  %s13 = sld [smem:[#allocation0]]
  $region86: #{_lambda_.1} parent=0
    _
  %s15 = ssub.s32 1, %s13
  %s16 = scalar_select 0, %s15, %s13
  $region1: #{_lambda_.1} parent=0
    #allocation2 [shape = 'u8[16384]{0}', space=vmem, size = 0x4000, scoped, tag = 'input window, operand 0, single buffered']
    #allocation3 [shape = 's32[1]{0}', space=sflag, size = 0x4, scoped, tag = 'scoped memory for _lambda_.1']
    #allocation4 [shape = 's32[1]{0}', space=sflag, size = 0x4, scoped, tag = 'scoped memory for _lambda_.1']
    #allocation5 [shape = 'u8[32768]{0}', space=vmem, size = 0x8000, scoped, tag = 'input window, operand 1, single buffered']
    #allocation6 [shape = 's32[1]{0}', space=sflag, size = 0x4, scoped, tag = 'scoped memory for _lambda_.1']
    #allocation7 [shape = 'u8[24576]{0}', space=vmem, size = 0x6000, scoped, tag = 'input window, operand 2, single buffered']
    #allocation8 [shape = 'u8[16384]{0}', space=vmem, size = 0x4000, scoped, tag = 'input window, operand 4, single buffered']
    #allocation9 [shape = 's32[1]{0}', space=sflag, size = 0x4, scoped, tag = 'scoped memory for _lambda_.1']
    #allocation10 [shape = 'u8[16384]{0}', space=vmem, size = 0x4000, scoped, tag = 'input window, operand 5, single buffered']
    #allocation11 [shape = 'u8[98304]{0}', space=vmem, size = 0x18000, scoped, tag = 'input window, operand 6, single buffered']
    #allocation12 [shape = 's32[1]{0}', space=sflag, size = 0x4, scoped, tag = 'scoped memory for _lambda_.1']
    #allocation13 [shape = 'u8[65536]{0}', space=vmem, size = 0x10000, scoped, tag = 'input window, operand 10, single buffered']
    #allocation14 [shape = 'u8[1024]{0}', space=vmem, size = 0x400, scoped, tag = 'output window, operand 0, single buffered']
    %17 = vsyncpa [#allocation3], 0
    %18 = vsyncpa [#allocation6], 0
    %19 = vsyncpa [#allocation9], 0
    %20 = vsyncpa [#allocation12], 0
    %21 = vsyncpa [#allocation4], 0
    // Predicated region
    $region2: #{_lambda_.1} parent=1 // pred_check
      _
    $region3: #{_lambda_.1} parent=1 // pred_check_branch
      %23 = sbr.rel (0) target = $region5
    $region4: #{_lambda_.1} parent=1 // pred_region
      %s25 = ssub.s32 512, 512
      %26 = vsyncadd [#allocation3], %s25
      %s27 = sshll.u32 [#allocation2], 4
      %s28 = int_to_ptr.vmem [resolvable:$true] %s27
      %33 = dma.hbm_to_vmem [thread:$0]  %s0, 512, %s28, [#allocation3], 128, 128, 8
    $region5: #{_lambda_.1} parent=1 // pred_fallthru
      _
    // Predicated region
    $region6: #{_lambda_.1} parent=1 // pred_check
      _
    $region7: #{_lambda_.1} parent=1 // pred_check_branch
      %35 = sbr.rel (0) target = $region9
    $region8: #{_lambda_.1} parent=1 // pred_region
      %s37 = ssub.s32 1024, 1024
      %38 = vsyncadd [#allocation6], %s37
      %s39 = sshll.u32 [#allocation5], 4
      %s40 = int_to_ptr.vmem [resolvable:$true] %s39
      %45 = dma.hbm_to_vmem [thread:$0]  %s1, 1024, %s40, [#allocation6], 128, 128, 8
    $region9: #{_lambda_.1} parent=1 // pred_fallthru
      _
    // Predicated region
    $region10: #{_lambda_.1} parent=1 // pred_check
      _
    $region11: #{_lambda_.1} parent=1 // pred_check_branch
      %47 = sbr.rel (0) target = $region13
    $region12: #{_lambda_.1} parent=1 // pred_region
      %s49 = ssub.s32 768, 768
      %50 = vsyncadd [#allocation6], %s49
      %s51 = sshll.u32 [#allocation7], 4
      %s52 = int_to_ptr.vmem [resolvable:$true] %s51
      %57 = dma.hbm_to_vmem [thread:$0]  %s2, 768, %s52, [#allocation6], 128, 128, 8
    $region13: #{_lambda_.1} parent=1 // pred_fallthru
      _
    // Predicated region
    $region14: #{_lambda_.1} parent=1 // pred_check
      _
    $region15: #{_lambda_.1} parent=1 // pred_check_branch
      %59 = sbr.rel (0) target = $region17
    $region16: #{_lambda_.1} parent=1 // pred_region
      _
    $region17: #{_lambda_.1} parent=1 // pred_fallthru
      _
    // Predicated region
    $region18: #{_lambda_.1} parent=1 // pred_check
      _
    $region19: #{_lambda_.1} parent=1 // pred_check_branch
      %61 = sbr.rel (0) target = $region21
    $region20: #{_lambda_.1} parent=1 // pred_region
      %s63 = ssub.s32 512, 512
      %64 = vsyncadd [#allocation9], %s63
      %s65 = sshll.u32 [#allocation8], 4
      %s66 = int_to_ptr.vmem [resolvable:$true] %s65
      %71 = dma.hbm_to_vmem [thread:$0]  %s4, 512, %s66, [#allocation9], 128, 128, 8
    $region21: #{_lambda_.1} parent=1 // pred_fallthru
      _
    // Predicated region
    $region22: #{_lambda_.1} parent=1 // pred_check
      _
    $region23: #{_lambda_.1} parent=1 // pred_check_branch
      %73 = sbr.rel (0) target = $region25
    $region24: #{_lambda_.1} parent=1 // pred_region
      %s75 = ssub.s32 512, 512
      %76 = vsyncadd [#allocation9], %s75
      %s77 = sshll.u32 [#allocation10], 4
      %s78 = int_to_ptr.vmem [resolvable:$true] %s77
      %83 = dma.hbm_to_vmem [thread:$0]  %s5, 512, %s78, [#allocation9], 128, 128, 8
    $region25: #{_lambda_.1} parent=1 // pred_fallthru
      _
    // Predicated region
    $region26: #{_lambda_.1} parent=1 // pred_check
      _
    $region27: #{_lambda_.1} parent=1 // pred_check_branch
      %85 = sbr.rel (0) target = $region29
    $region28: #{_lambda_.1} parent=1 // pred_region
      %s87 = ssub.s32 3072, 3072
      %88 = vsyncadd [#allocation12], %s87
      %s89 = sshll.u32 [#allocation11], 4
      %s90 = int_to_ptr.vmem [resolvable:$true] %s89
      %95 = dma.hbm_to_vmem [thread:$0]  %s6, 3072, %s90, [#allocation12], 128, 128, 8
    $region29: #{_lambda_.1} parent=1 // pred_fallthru
      _
    // Predicated region
    $region30: #{_lambda_.1} parent=1 // pred_check
      _
    $region31: #{_lambda_.1} parent=1 // pred_check_branch
      %97 = sbr.rel (0) target = $region33
    $region32: #{_lambda_.1} parent=1 // pred_region
      _
    $region33: #{_lambda_.1} parent=1 // pred_fallthru
      _
    // Predicated region
    $region34: #{_lambda_.1} parent=1 // pred_check
      _
    $region35: #{_lambda_.1} parent=1 // pred_check_branch
      %99 = sbr.rel (0) target = $region37
    $region36: #{_lambda_.1} parent=1 // pred_region
      _
    $region37: #{_lambda_.1} parent=1 // pred_fallthru
      _
    // Predicated region
    $region38: #{_lambda_.1} parent=1 // pred_check
      _
    $region39: #{_lambda_.1} parent=1 // pred_check_branch
      %101 = sbr.rel (0) target = $region41
    $region40: #{_lambda_.1} parent=1 // pred_region
      _
    $region41: #{_lambda_.1} parent=1 // pred_fallthru
      _
    // Predicated region
    $region42: #{_lambda_.1} parent=1 // pred_check
      _
    $region43: #{_lambda_.1} parent=1 // pred_check_branch
      %103 = sbr.rel (0) target = $region45
    $region44: #{_lambda_.1} parent=1 // pred_region
      %s105 = ssub.s32 2048, 2048
      %106 = vsyncadd [#allocation12], %s105
      %s107 = sshll.u32 [#allocation13], 4
      %s108 = int_to_ptr.vmem [resolvable:$true] %s107
      %113 = dma.hbm_to_vmem [thread:$0]  %s10, 2048, %s108, [#allocation12], 128, 128, 8
    $region45: #{_lambda_.1} parent=1 // pred_fallthru
      _
    // Predicated region
    $region46: #{_lambda_.1} parent=1 // pred_check
      _
    $region47: #{_lambda_.1} parent=1 // pred_check_branch
      %115 = sbr.rel (0) target = $region49
    $region48: #{_lambda_.1} parent=1 // pred_region
      _
    $region49: #{_lambda_.1} parent=1 // pred_fallthru
      _
    // Predicated region
    $region50: #{_lambda_.1} parent=1 // pred_check
      _
    $region51: #{_lambda_.1} parent=1 // pred_check_branch
      %117 = sbr.rel (0) target = $region53
    $region52: #{_lambda_.1} parent=1 // pred_region
      %118 = dma.done [#allocation3], 512
    $region53: #{_lambda_.1} parent=1 // pred_fallthru
      _
    // Predicated region
    $region54: #{_lambda_.1} parent=1 // pred_check
      _
    $region55: #{_lambda_.1} parent=1 // pred_check_branch
      %120 = sbr.rel (0) target = $region57
    $region56: #{_lambda_.1} parent=1 // pred_region
      %121 = dma.done [#allocation6], 1024
    $region57: #{_lambda_.1} parent=1 // pred_fallthru
      _
    // Predicated region
    $region58: #{_lambda_.1} parent=1 // pred_check
      _
    $region59: #{_lambda_.1} parent=1 // pred_check_branch
      %123 = sbr.rel (0) target = $region61
    $region60: #{_lambda_.1} parent=1 // pred_region
      %124 = dma.done [#allocation6], 768
    $region61: #{_lambda_.1} parent=1 // pred_fallthru
      _
    // Predicated region
    $region62: #{_lambda_.1} parent=1 // pred_check
      _
    $region63: #{_lambda_.1} parent=1 // pred_check_branch
      %126 = sbr.rel (0) target = $region65
    $region64: #{_lambda_.1} parent=1 // pred_region
      %127 = dma.done [#allocation9], 512
    $region65: #{_lambda_.1} parent=1 // pred_fallthru
      _
    // Predicated region
    $region66: #{_lambda_.1} parent=1 // pred_check
      _
    $region67: #{_lambda_.1} parent=1 // pred_check_branch
      %129 = sbr.rel (0) target = $region69
    $region68: #{_lambda_.1} parent=1 // pred_region
      %130 = dma.done [#allocation9], 512
    $region69: #{_lambda_.1} parent=1 // pred_fallthru
      _
    // Predicated region
    $region70: #{_lambda_.1} parent=1 // pred_check
      _
    $region71: #{_lambda_.1} parent=1 // pred_check_branch
      %132 = sbr.rel (0) target = $region73
    $region72: #{_lambda_.1} parent=1 // pred_region
      %133 = dma.done [#allocation12], 3072
    $region73: #{_lambda_.1} parent=1 // pred_fallthru
      _
    // Predicated region
    $region74: #{_lambda_.1} parent=1 // pred_check
      _
    $region75: #{_lambda_.1} parent=1 // pred_check_branch
      %135 = sbr.rel (0) target = $region77
    $region76: #{_lambda_.1} parent=1 // pred_region
      %136 = dma.done [#allocation12], 2048
    $region77: #{_lambda_.1} parent=1 // pred_fallthru
      _
    %v137 = vld [vmem:[#allocation2] sm:$0xff]
    %v138 = vld [vmem:[#allocation2 + $0x8] sm:$0xff]
    %v139 = vld [vmem:[#allocation2 + $0x10] sm:$0xff]
    %v140 = vld [vmem:[#allocation2 + $0x18] sm:$0xff]
    %s141 = scalar_lea.vmem [#allocation7], 16
    %v142 = vld [vmem:[%s141] sm:$0xff]
    %v143 = vld [vmem:[%s141 + $0x8] sm:$0xff]
    %v144 = vld [vmem:[#allocation5] sm:$0xff]
    %v145 = vld [vmem:[#allocation5 + $0x8] sm:$0xff]
    %v146 = vld [vmem:[#allocation5 + $0x10] sm:$0xff]
    %v147 = vld [vmem:[#allocation5 + $0x18] sm:$0xff]
    %vm148 = vcmask 261120
    %v150 = vsel %vm148, %v144, 0
    %v153 = vsel %vm148, %v145, 0
    %v156 = vsel %vm148, %v146, 0
    %v159 = vsel %vm148, %v147, 0
    %161 = vmatprep.subr.mxu0 0.0
    %162 = vmatpush1.msra.mxu0 %v137
    %163 = vmatprep.subr.mxu0 0.0
    %164 = vmatpush1.msra.mxu0 %v138
    %165 = vmatprep.subr.mxu0 0.0
    %166 = vmatpush1.msra.mxu0 %v139
    %167 = vmatprep.subr.mxu0 0.0
    %168 = vmatpush1.msra.mxu0 %v140
    %169 = vmatprep.subr.mxu0 0.0
    %170 = vmatpush1.msra.mxu0 0.0
    %171 = vmatprep.subr.mxu0 0.0
    %172 = vmatpush1.msra.mxu0 0.0
    %173 = vmatprep.subr.mxu0 0.0
    %174 = vmatpush1.msra.mxu0 0.0
    %175 = vmatprep.subr.mxu0 0.0
    %176 = vmatpush1.msra.mxu0 0.0
    %177 = vmatprep.subr.mxu0 0.0
    %178 = vmatpush1.msra.mxu0 0.0
    %179 = vmatprep.subr.mxu0 0.0
    %180 = vmatpush1.msra.mxu0 0.0
    %181 = vmatprep.subr.mxu0 0.0
    %182 = vmatpush1.msra.mxu0 0.0
    %183 = vmatprep.subr.mxu0 0.0
    %184 = vmatpush1.msra.mxu0 0.0
    %185 = vmatprep.subr.mxu0 0.0
    %186 = vmatpush1.msra.mxu0 0.0
    %187 = vmatprep.subr.mxu0 0.0
    %188 = vmatpush1.msra.mxu0 0.0
    %189 = vmatprep.subr.mxu0 0.0
    %190 = vmatpush1.msra.mxu0 0.0
    %191 = vmatprep.subr.mxu0 0.0
    %192 = vmatpush1.msra.mxu0 0.0
    %193 = vmatprep.subr.mxu0 0.0
    %194 = vmatpush1.msra.mxu0 0.0
    %195 = vmatprep.subr.mxu0 0.0
    %196 = vmatpush1.msra.mxu0 0.0
    %197 = vmatprep.subr.mxu0 0.0
    %198 = vmatpush1.msra.mxu0 0.0
    %199 = vmatprep.subr.mxu0 0.0
    %200 = vmatpush1.msra.mxu0 0.0
    %201 = vmatprep.subr.mxu0 0.0
    %202 = vmatpush1.msra.mxu0 0.0
    %203 = vmatprep.subr.mxu0 0.0
    %204 = vmatpush1.msra.mxu0 0.0
    %205 = vmatprep.subr.mxu0 0.0
    %206 = vmatpush1.msra.mxu0 0.0
    %207 = vmatprep.subr.mxu0 0.0
    %208 = vmatpush1.msra.mxu0 0.0
    %209 = vmatprep.subr.mxu0 0.0
    %210 = vmatpush1.msra.mxu0 0.0
    %211 = vmatprep.subr.mxu0 0.0
    %212 = vmatpush1.msra.mxu0 0.0
    %213 = vmatprep.subr.mxu0 0.0
    %214 = vmatpush1.msra.mxu0 0.0
    %215 = vmatprep.subr.mxu0 0.0
    %216 = vmatpush1.msra.mxu0 0.0
    %217 = vmatprep.subr.mxu0 0.0
    %218 = vmatpush1.msra.mxu0 0.0
    %219 = vmatprep.subr.mxu0 0.0
    %220 = vmatpush1.msra.mxu0 0.0
    %221 = vmatprep.subr.mxu0 0.0
    %222 = vmatpush1.msra.mxu0 0.0
    %223 = vmatprep.subr.mxu0 0.0
    %224 = vmatpush1.msra.mxu0 0.0
    %225 = vmatprep.mubr.f32.mxu0 0.0
    %226 = vmatmul.mubr.f32.gmra.mrb[0].mxu0 %v150
    %v227 = vpop.f32.mrb[0].mxu0
    %v228 = vadd.f32 0.0, %v227
    %v229 = vpop.f32.mrb[0].mxu0
    %230 = vmatprep.mubr.f32.mxu0 0.0
    %231 = vmatmul.mubr.f32.gmra.mrb[0].mxu0 %v153
    %v232 = vpop.f32.mrb[0].mxu0
    %v233 = vadd.f32 0.0, %v232
    %v234 = vpop.f32.mrb[0].mxu0
    %235 = vmatprep.mubr.f32.mxu0 0.0
    %236 = vmatmul.mubr.f32.gmra.mrb[0].mxu0 %v156
    %v237 = vpop.f32.mrb[0].mxu0
    %v238 = vadd.f32 0.0, %v237
    %v239 = vpop.f32.mrb[0].mxu0
    %240 = vmatprep.mubr.f32.mxu0 0.0
    %241 = vmatmul.mubr.f32.gmra.mrb[0].mxu0 %v159
    %v242 = vpop.f32.mrb[0].mxu0
    %v243 = vadd.f32 0.0, %v242
    %v244 = vpop.f32.mrb[0].mxu0
    %245 = vdwg.mxu0
    %v246 = vld [vmem:[#allocation7] sm:$0xff]
    %v247 = vld [vmem:[#allocation7 + $0x8] sm:$0xff]
    %vm248 = vcmask 130048
    %v250 = vsel %vm248, %v228, 0
    %v253 = vsel %vm248, %v233, 0
    %v256 = vsel %vm248, %v238, 0
    %v259 = vsel %vm248, %v243, 0
    %261 = vmatprep.subr.mxu0 0.0
    %262 = vmatpush1.msra.mxu0 %v246
    %263 = vmatprep.subr.mxu0 0.0
    %264 = vmatpush1.msra.mxu0 %v247
    %265 = vmatprep.subr.mxu0 0.0
    %266 = vmatpush1.msra.mxu0 0.0
    %267 = vmatprep.subr.mxu0 0.0
    %268 = vmatpush1.msra.mxu0 0.0
    %269 = vmatprep.subr.mxu0 0.0
    %270 = vmatpush1.msra.mxu0 0.0
    %271 = vmatprep.subr.mxu0 0.0
    %272 = vmatpush1.msra.mxu0 0.0
    %273 = vmatprep.subr.mxu0 0.0
    %274 = vmatpush1.msra.mxu0 0.0
    %275 = vmatprep.subr.mxu0 0.0
    %276 = vmatpush1.msra.mxu0 0.0
    %277 = vmatprep.subr.mxu0 0.0
    %278 = vmatpush1.msra.mxu0 0.0
    %279 = vmatprep.subr.mxu0 0.0
    %280 = vmatpush1.msra.mxu0 0.0
    %281 = vmatprep.subr.mxu0 0.0
    %282 = vmatpush1.msra.mxu0 0.0
    %283 = vmatprep.subr.mxu0 0.0
    %284 = vmatpush1.msra.mxu0 0.0
    %285 = vmatprep.subr.mxu0 0.0
    %286 = vmatpush1.msra.mxu0 0.0
    %287 = vmatprep.subr.mxu0 0.0
    %288 = vmatpush1.msra.mxu0 0.0
    %289 = vmatprep.subr.mxu0 0.0
    %290 = vmatpush1.msra.mxu0 0.0
    %291 = vmatprep.subr.mxu0 0.0
    %292 = vmatpush1.msra.mxu0 0.0
    %293 = vmatprep.subr.mxu0 0.0
    %294 = vmatpush1.msra.mxu0 0.0
    %295 = vmatprep.subr.mxu0 0.0
    %296 = vmatpush1.msra.mxu0 0.0
    %297 = vmatprep.subr.mxu0 0.0
    %298 = vmatpush1.msra.mxu0 0.0
    %299 = vmatprep.subr.mxu0 0.0
    %300 = vmatpush1.msra.mxu0 0.0
    %301 = vmatprep.subr.mxu0 0.0
    %302 = vmatpush1.msra.mxu0 0.0
    %303 = vmatprep.subr.mxu0 0.0
    %304 = vmatpush1.msra.mxu0 0.0
    %305 = vmatprep.subr.mxu0 0.0
    %306 = vmatpush1.msra.mxu0 0.0
    %307 = vmatprep.subr.mxu0 0.0
    %308 = vmatpush1.msra.mxu0 0.0
    %309 = vmatprep.subr.mxu0 0.0
    %310 = vmatpush1.msra.mxu0 0.0
    %311 = vmatprep.subr.mxu0 0.0
    %312 = vmatpush1.msra.mxu0 0.0
    %313 = vmatprep.subr.mxu0 0.0
    %314 = vmatpush1.msra.mxu0 0.0
    %315 = vmatprep.subr.mxu0 0.0
    %316 = vmatpush1.msra.mxu0 0.0
    %317 = vmatprep.subr.mxu0 0.0
    %318 = vmatpush1.msra.mxu0 0.0
    %319 = vmatprep.subr.mxu0 0.0
    %320 = vmatpush1.msra.mxu0 0.0
    %321 = vmatprep.subr.mxu0 0.0
    %322 = vmatpush1.msra.mxu0 0.0
    %323 = vmatprep.subr.mxu0 0.0
    %324 = vmatpush1.msra.mxu0 0.0
    %325 = vmatprep.mubr.f32.mxu0 0.0
    %326 = vmatmul.mubr.f32.gmra.mrb[0].mxu0 %v250
    %v327 = vpop.f32.mrb[0].mxu0
    %v328 = vadd.f32 0.0, %v327
    %v329 = vpop.f32.mrb[0].mxu0
    %330 = vmatprep.mubr.f32.mxu0 0.0
    %331 = vmatmul.mubr.f32.gmra.mrb[0].mxu0 %v253
    %v332 = vpop.f32.mrb[0].mxu0
    %v333 = vadd.f32 0.0, %v332
    %v334 = vpop.f32.mrb[0].mxu0
    %335 = vmatprep.mubr.f32.mxu0 0.0
    %336 = vmatmul.mubr.f32.gmra.mrb[0].mxu0 %v256
    %v337 = vpop.f32.mrb[0].mxu0
    %v338 = vadd.f32 0.0, %v337
    %v339 = vpop.f32.mrb[0].mxu0
    %340 = vmatprep.mubr.f32.mxu0 0.0
    %341 = vmatmul.mubr.f32.gmra.mrb[0].mxu0 %v259
    %v342 = vpop.f32.mrb[0].mxu0
    %v343 = vadd.f32 0.0, %v342
    %v344 = vpop.f32.mrb[0].mxu0
    %345 = vdwg.mxu0
    %v347 = vsel %vm248, %v137, 0
    %v350 = vsel %vm248, %v138, 0
    %v353 = vsel %vm248, %v139, 0
    %v356 = vsel %vm248, %v140, 0
    %358 = vmatprep.subr.mxu0 0.0
    %359 = vmatpush1.msra.mxu0 %v142
    %360 = vmatprep.subr.mxu0 0.0
    %361 = vmatpush1.msra.mxu0 %v143
    %362 = vmatprep.subr.mxu0 0.0
    %363 = vmatpush1.msra.mxu0 0.0
    %364 = vmatprep.subr.mxu0 0.0
    %365 = vmatpush1.msra.mxu0 0.0
    %366 = vmatprep.subr.mxu0 0.0
    %367 = vmatpush1.msra.mxu0 0.0
    %368 = vmatprep.subr.mxu0 0.0
    %369 = vmatpush1.msra.mxu0 0.0
    %370 = vmatprep.subr.mxu0 0.0
    %371 = vmatpush1.msra.mxu0 0.0
    %372 = vmatprep.subr.mxu0 0.0
    %373 = vmatpush1.msra.mxu0 0.0
    %374 = vmatprep.subr.mxu0 0.0
    %375 = vmatpush1.msra.mxu0 0.0
    %376 = vmatprep.subr.mxu0 0.0
    %377 = vmatpush1.msra.mxu0 0.0
    %378 = vmatprep.subr.mxu0 0.0
    %379 = vmatpush1.msra.mxu0 0.0
    %380 = vmatprep.subr.mxu0 0.0
    %381 = vmatpush1.msra.mxu0 0.0
    %382 = vmatprep.subr.mxu0 0.0
    %383 = vmatpush1.msra.mxu0 0.0
    %384 = vmatprep.subr.mxu0 0.0
    %385 = vmatpush1.msra.mxu0 0.0
    %386 = vmatprep.subr.mxu0 0.0
    %387 = vmatpush1.msra.mxu0 0.0
    %388 = vmatprep.subr.mxu0 0.0
    %389 = vmatpush1.msra.mxu0 0.0
    %390 = vmatprep.subr.mxu0 0.0
    %391 = vmatpush1.msra.mxu0 0.0
    %392 = vmatprep.subr.mxu0 0.0
    %393 = vmatpush1.msra.mxu0 0.0
    %394 = vmatprep.subr.mxu0 0.0
    %395 = vmatpush1.msra.mxu0 0.0
    %396 = vmatprep.subr.mxu0 0.0
    %397 = vmatpush1.msra.mxu0 0.0
    %398 = vmatprep.subr.mxu0 0.0
    %399 = vmatpush1.msra.mxu0 0.0
    %400 = vmatprep.subr.mxu0 0.0
    %401 = vmatpush1.msra.mxu0 0.0
    %402 = vmatprep.subr.mxu0 0.0
    %403 = vmatpush1.msra.mxu0 0.0
    %404 = vmatprep.subr.mxu0 0.0
    %405 = vmatpush1.msra.mxu0 0.0
    %406 = vmatprep.subr.mxu0 0.0
    %407 = vmatpush1.msra.mxu0 0.0
    %408 = vmatprep.subr.mxu0 0.0
    %409 = vmatpush1.msra.mxu0 0.0
    %410 = vmatprep.subr.mxu0 0.0
    %411 = vmatpush1.msra.mxu0 0.0
    %412 = vmatprep.subr.mxu0 0.0
    %413 = vmatpush1.msra.mxu0 0.0
    %414 = vmatprep.subr.mxu0 0.0
    %415 = vmatpush1.msra.mxu0 0.0
    %416 = vmatprep.subr.mxu0 0.0
    %417 = vmatpush1.msra.mxu0 0.0
    %418 = vmatprep.subr.mxu0 0.0
    %419 = vmatpush1.msra.mxu0 0.0
    %420 = vmatprep.subr.mxu0 0.0
    %421 = vmatpush1.msra.mxu0 0.0
    %422 = vmatprep.mubr.f32.mxu0 0.0
    %423 = vmatmul.mubr.f32.gmra.mrb[0].mxu0 %v347
    %v424 = vpop.f32.mrb[0].mxu0
    %v425 = vadd.f32 %v328, %v424
    %v426 = vpop.f32.mrb[0].mxu0
    %427 = vmatprep.mubr.f32.mxu0 0.0
    %428 = vmatmul.mubr.f32.gmra.mrb[0].mxu0 %v350
    %v429 = vpop.f32.mrb[0].mxu0
    %v430 = vadd.f32 %v333, %v429
    %v431 = vpop.f32.mrb[0].mxu0
    %432 = vmatprep.mubr.f32.mxu0 0.0
    %433 = vmatmul.mubr.f32.gmra.mrb[0].mxu0 %v353
    %v434 = vpop.f32.mrb[0].mxu0
    %v435 = vadd.f32 %v338, %v434
    %v436 = vpop.f32.mrb[0].mxu0
    %437 = vmatprep.mubr.f32.mxu0 0.0
    %438 = vmatmul.mubr.f32.gmra.mrb[0].mxu0 %v356
    %v439 = vpop.f32.mrb[0].mxu0
    %v440 = vadd.f32 %v343, %v439
    %v441 = vpop.f32.mrb[0].mxu0
    %442 = vdwg.mxu0
    %s443 = scalar_lea.vmem [#allocation5], 32
    %v444 = vld [vmem:[%s443] sm:$0xff]
    %v445 = vld [vmem:[%s443 + $0x8] sm:$0xff]
    %v446 = vld [vmem:[%s443 + $0x10] sm:$0xff]
    %v447 = vld [vmem:[%s443 + $0x18] sm:$0xff]
    %v449 = vsel %vm148, %v444, 0
    %v452 = vsel %vm148, %v445, 0
    %v455 = vsel %vm148, %v446, 0
    %v458 = vsel %vm148, %v447, 0
    %460 = vmatprep.subr.mxu0 0.0
    %461 = vmatpush1.msra.mxu0 %v137
    %462 = vmatprep.subr.mxu0 0.0
    %463 = vmatpush1.msra.mxu0 %v138
    %464 = vmatprep.subr.mxu0 0.0
    %465 = vmatpush1.msra.mxu0 %v139
    %466 = vmatprep.subr.mxu0 0.0
    %467 = vmatpush1.msra.mxu0 %v140
    %468 = vmatprep.subr.mxu0 0.0
    %469 = vmatpush1.msra.mxu0 0.0
    %470 = vmatprep.subr.mxu0 0.0
    %471 = vmatpush1.msra.mxu0 0.0
    %472 = vmatprep.subr.mxu0 0.0
    %473 = vmatpush1.msra.mxu0 0.0
    %474 = vmatprep.subr.mxu0 0.0
    %475 = vmatpush1.msra.mxu0 0.0
    %476 = vmatprep.subr.mxu0 0.0
    %477 = vmatpush1.msra.mxu0 0.0
    %478 = vmatprep.subr.mxu0 0.0
    %479 = vmatpush1.msra.mxu0 0.0
    %480 = vmatprep.subr.mxu0 0.0
    %481 = vmatpush1.msra.mxu0 0.0
    %482 = vmatprep.subr.mxu0 0.0
    %483 = vmatpush1.msra.mxu0 0.0
    %484 = vmatprep.subr.mxu0 0.0
    %485 = vmatpush1.msra.mxu0 0.0
    %486 = vmatprep.subr.mxu0 0.0
    %487 = vmatpush1.msra.mxu0 0.0
    %488 = vmatprep.subr.mxu0 0.0
    %489 = vmatpush1.msra.mxu0 0.0
    %490 = vmatprep.subr.mxu0 0.0
    %491 = vmatpush1.msra.mxu0 0.0
    %492 = vmatprep.subr.mxu0 0.0
    %493 = vmatpush1.msra.mxu0 0.0
    %494 = vmatprep.subr.mxu0 0.0
    %495 = vmatpush1.msra.mxu0 0.0
    %496 = vmatprep.subr.mxu0 0.0
    %497 = vmatpush1.msra.mxu0 0.0
    %498 = vmatprep.subr.mxu0 0.0
    %499 = vmatpush1.msra.mxu0 0.0
    %500 = vmatprep.subr.mxu0 0.0
    %501 = vmatpush1.msra.mxu0 0.0
    %502 = vmatprep.subr.mxu0 0.0
    %503 = vmatpush1.msra.mxu0 0.0
    %504 = vmatprep.subr.mxu0 0.0
    %505 = vmatpush1.msra.mxu0 0.0
    %506 = vmatprep.subr.mxu0 0.0
    %507 = vmatpush1.msra.mxu0 0.0
    %508 = vmatprep.subr.mxu0 0.0
    %509 = vmatpush1.msra.mxu0 0.0
    %510 = vmatprep.subr.mxu0 0.0
    %511 = vmatpush1.msra.mxu0 0.0
    %512 = vmatprep.subr.mxu0 0.0
    %513 = vmatpush1.msra.mxu0 0.0
    %514 = vmatprep.subr.mxu0 0.0
    %515 = vmatpush1.msra.mxu0 0.0
    %516 = vmatprep.subr.mxu0 0.0
    %517 = vmatpush1.msra.mxu0 0.0
    %518 = vmatprep.subr.mxu0 0.0
    %519 = vmatpush1.msra.mxu0 0.0
    %520 = vmatprep.subr.mxu0 0.0
    %521 = vmatpush1.msra.mxu0 0.0
    %522 = vmatprep.subr.mxu0 0.0
    %523 = vmatpush1.msra.mxu0 0.0
    %524 = vmatprep.mubr.f32.mxu0 0.0
    %525 = vmatmul.mubr.f32.gmra.mrb[0].mxu0 %v449
    %v526 = vpop.f32.mrb[0].mxu0
    %v527 = vadd.f32 0.0, %v526
    %v528 = vpop.f32.mrb[0].mxu0
    %529 = vmatprep.mubr.f32.mxu0 0.0
    %530 = vmatmul.mubr.f32.gmra.mrb[0].mxu0 %v452
    %v531 = vpop.f32.mrb[0].mxu0
    %v532 = vadd.f32 0.0, %v531
    %v533 = vpop.f32.mrb[0].mxu0
    %534 = vmatprep.mubr.f32.mxu0 0.0
    %535 = vmatmul.mubr.f32.gmra.mrb[0].mxu0 %v455
    %v536 = vpop.f32.mrb[0].mxu0
    %v537 = vadd.f32 0.0, %v536
    %v538 = vpop.f32.mrb[0].mxu0
    %539 = vmatprep.mubr.f32.mxu0 0.0
    %540 = vmatmul.mubr.f32.gmra.mrb[0].mxu0 %v458
    %v541 = vpop.f32.mrb[0].mxu0
    %v542 = vadd.f32 0.0, %v541
    %v543 = vpop.f32.mrb[0].mxu0
    %544 = vdwg.mxu0
    %s545 = scalar_lea.vmem [#allocation7], 32
    %v546 = vld [vmem:[%s545] sm:$0xff]
    %v547 = vld [vmem:[%s545 + $0x8] sm:$0xff]
    %v549 = vsel %vm248, %v527, 0
    %v552 = vsel %vm248, %v532, 0
    %v555 = vsel %vm248, %v537, 0
    %v558 = vsel %vm248, %v542, 0
    %560 = vmatprep.subr.mxu0 0.0
    %561 = vmatpush1.msra.mxu0 %v546
    %562 = vmatprep.subr.mxu0 0.0
    %563 = vmatpush1.msra.mxu0 %v547
    %564 = vmatprep.subr.mxu0 0.0
    %565 = vmatpush1.msra.mxu0 0.0
    %566 = vmatprep.subr.mxu0 0.0
    %567 = vmatpush1.msra.mxu0 0.0
    %568 = vmatprep.subr.mxu0 0.0
    %569 = vmatpush1.msra.mxu0 0.0
    %570 = vmatprep.subr.mxu0 0.0
    %571 = vmatpush1.msra.mxu0 0.0
    %572 = vmatprep.subr.mxu0 0.0
    %573 = vmatpush1.msra.mxu0 0.0
    %574 = vmatprep.subr.mxu0 0.0
    %575 = vmatpush1.msra.mxu0 0.0
    %576 = vmatprep.subr.mxu0 0.0
    %577 = vmatpush1.msra.mxu0 0.0
    %578 = vmatprep.subr.mxu0 0.0
    %579 = vmatpush1.msra.mxu0 0.0
    %580 = vmatprep.subr.mxu0 0.0
    %581 = vmatpush1.msra.mxu0 0.0
    %582 = vmatprep.subr.mxu0 0.0
    %583 = vmatpush1.msra.mxu0 0.0
    %584 = vmatprep.subr.mxu0 0.0
    %585 = vmatpush1.msra.mxu0 0.0
    %586 = vmatprep.subr.mxu0 0.0
    %587 = vmatpush1.msra.mxu0 0.0
    %588 = vmatprep.subr.mxu0 0.0
    %589 = vmatpush1.msra.mxu0 0.0
    %590 = vmatprep.subr.mxu0 0.0
    %591 = vmatpush1.msra.mxu0 0.0
    %592 = vmatprep.subr.mxu0 0.0
    %593 = vmatpush1.msra.mxu0 0.0
    %594 = vmatprep.subr.mxu0 0.0
    %595 = vmatpush1.msra.mxu0 0.0
    %596 = vmatprep.subr.mxu0 0.0
    %597 = vmatpush1.msra.mxu0 0.0
    %598 = vmatprep.subr.mxu0 0.0
    %599 = vmatpush1.msra.mxu0 0.0
    %600 = vmatprep.subr.mxu0 0.0
    %601 = vmatpush1.msra.mxu0 0.0
    %602 = vmatprep.subr.mxu0 0.0
    %603 = vmatpush1.msra.mxu0 0.0
    %604 = vmatprep.subr.mxu0 0.0
    %605 = vmatpush1.msra.mxu0 0.0
    %606 = vmatprep.subr.mxu0 0.0
    %607 = vmatpush1.msra.mxu0 0.0
    %608 = vmatprep.subr.mxu0 0.0
    %609 = vmatpush1.msra.mxu0 0.0
    %610 = vmatprep.subr.mxu0 0.0
    %611 = vmatpush1.msra.mxu0 0.0
    %612 = vmatprep.subr.mxu0 0.0
    %613 = vmatpush1.msra.mxu0 0.0
    %614 = vmatprep.subr.mxu0 0.0
    %615 = vmatpush1.msra.mxu0 0.0
    %616 = vmatprep.subr.mxu0 0.0
    %617 = vmatpush1.msra.mxu0 0.0
    %618 = vmatprep.subr.mxu0 0.0
    %619 = vmatpush1.msra.mxu0 0.0
    %620 = vmatprep.subr.mxu0 0.0
    %621 = vmatpush1.msra.mxu0 0.0
    %622 = vmatprep.subr.mxu0 0.0
    %623 = vmatpush1.msra.mxu0 0.0
    %624 = vmatprep.mubr.f32.mxu0 0.0
    %625 = vmatmul.mubr.f32.gmra.mrb[0].mxu0 %v549
    %v626 = vpop.f32.mrb[0].mxu0
    %v627 = vadd.f32 0.0, %v626
    %v628 = vpop.f32.mrb[0].mxu0
    %629 = vmatprep.mubr.f32.mxu0 0.0
    %630 = vmatmul.mubr.f32.gmra.mrb[0].mxu0 %v552
    %v631 = vpop.f32.mrb[0].mxu0
    %v632 = vadd.f32 0.0, %v631
    %v633 = vpop.f32.mrb[0].mxu0
    %634 = vmatprep.mubr.f32.mxu0 0.0
    %635 = vmatmul.mubr.f32.gmra.mrb[0].mxu0 %v555
    %v636 = vpop.f32.mrb[0].mxu0
    %v637 = vadd.f32 0.0, %v636
    %v638 = vpop.f32.mrb[0].mxu0
    %639 = vmatprep.mubr.f32.mxu0 0.0
    %640 = vmatmul.mubr.f32.gmra.mrb[0].mxu0 %v558
    %v641 = vpop.f32.mrb[0].mxu0
    %v642 = vadd.f32 0.0, %v641
    %v643 = vpop.f32.mrb[0].mxu0
    %644 = vdwg.mxu0
    %v645 = vadd.f32 %v425, %v627
    %v646 = vadd.f32 %v430, %v632
    %v647 = vadd.f32 %v435, %v637
    %v648 = vadd.f32 %v440, %v642
    %v649 = vld [vmem:[%s3] sm:$0x1]
    %v651 = vlaneseq
    %v652 = vshrl.u32 %v651, 7
    %v653 = vsub.s32 0, %v652
    %v654 = vrot.slane %v649, %v653
    %v656 = vadd.f32 %v645, %v654
    %v657 = vadd.f32 %v646, %v654
    %v658 = vadd.f32 %v647, %v654
    %v659 = vadd.f32 %v648, %v654
    %v660 = vmax.f32 %v656, 0.0
    %v661 = vmax.f32 %v657, 0.0
    %v662 = vmax.f32 %v658, 0.0
    %v663 = vmax.f32 %v659, 0.0
    %668 = vrot.lane.b32.xlu0 %v660, 64
    %v669 = vpop.permute.xlu0 %668
    %670 = vrot.lane.b32.xlu0 %v661, 64
    %v671 = vpop.permute.xlu0 %670
    %672 = vrot.lane.b32.xlu0 %v662, 64
    %v673 = vpop.permute.xlu0 %672
    %674 = vrot.lane.b32.xlu0 %v663, 64
    %v675 = vpop.permute.xlu0 %674
    %v680 = vmax.f32 %v660, %v669
    %v681 = vmax.f32 %v661, %v671
    %v682 = vmax.f32 %v662, %v673
    %v683 = vmax.f32 %v663, %v675
    %v684 = vld [vmem:[#allocation8] sm:$0xff]
    %v685 = vld [vmem:[#allocation8 + $0x8] sm:$0xff]
    %v687 = vsel %vm148, %v684, 0
    %v690 = vsel %vm148, %v685, 0
    %692 = vmatprep.subr.mxu0 0.0
    %693 = vmatpush1.msra.mxu0 %v680
    %694 = vmatprep.subr.mxu0 0.0
    %695 = vmatpush1.msra.mxu0 %v681
    %696 = vmatprep.subr.mxu0 0.0
    %697 = vmatpush1.msra.mxu0 %v682
    %698 = vmatprep.subr.mxu0 0.0
    %699 = vmatpush1.msra.mxu0 %v683
    %700 = vmatprep.subr.mxu0 0.0
    %701 = vmatpush1.msra.mxu0 0.0
    %702 = vmatprep.subr.mxu0 0.0
    %703 = vmatpush1.msra.mxu0 0.0
    %704 = vmatprep.subr.mxu0 0.0
    %705 = vmatpush1.msra.mxu0 0.0
    %706 = vmatprep.subr.mxu0 0.0
    %707 = vmatpush1.msra.mxu0 0.0
    %708 = vmatprep.subr.mxu0 0.0
    %709 = vmatpush1.msra.mxu0 0.0
    %710 = vmatprep.subr.mxu0 0.0
    %711 = vmatpush1.msra.mxu0 0.0
    %712 = vmatprep.subr.mxu0 0.0
    %713 = vmatpush1.msra.mxu0 0.0
    %714 = vmatprep.subr.mxu0 0.0
    %715 = vmatpush1.msra.mxu0 0.0
    %716 = vmatprep.subr.mxu0 0.0
    %717 = vmatpush1.msra.mxu0 0.0
    %718 = vmatprep.subr.mxu0 0.0
    %719 = vmatpush1.msra.mxu0 0.0
    %720 = vmatprep.subr.mxu0 0.0
    %721 = vmatpush1.msra.mxu0 0.0
    %722 = vmatprep.subr.mxu0 0.0
    %723 = vmatpush1.msra.mxu0 0.0
    %724 = vmatprep.subr.mxu0 0.0
    %725 = vmatpush1.msra.mxu0 0.0
    %726 = vmatprep.subr.mxu0 0.0
    %727 = vmatpush1.msra.mxu0 0.0
    %728 = vmatprep.subr.mxu0 0.0
    %729 = vmatpush1.msra.mxu0 0.0
    %730 = vmatprep.subr.mxu0 0.0
    %731 = vmatpush1.msra.mxu0 0.0
    %732 = vmatprep.subr.mxu0 0.0
    %733 = vmatpush1.msra.mxu0 0.0
    %734 = vmatprep.subr.mxu0 0.0
    %735 = vmatpush1.msra.mxu0 0.0
    %736 = vmatprep.subr.mxu0 0.0
    %737 = vmatpush1.msra.mxu0 0.0
    %738 = vmatprep.subr.mxu0 0.0
    %739 = vmatpush1.msra.mxu0 0.0
    %740 = vmatprep.subr.mxu0 0.0
    %741 = vmatpush1.msra.mxu0 0.0
    %742 = vmatprep.subr.mxu0 0.0
    %743 = vmatpush1.msra.mxu0 0.0
    %744 = vmatprep.subr.mxu0 0.0
    %745 = vmatpush1.msra.mxu0 0.0
    %746 = vmatprep.subr.mxu0 0.0
    %747 = vmatpush1.msra.mxu0 0.0
    %748 = vmatprep.subr.mxu0 0.0
    %749 = vmatpush1.msra.mxu0 0.0
    %750 = vmatprep.subr.mxu0 0.0
    %751 = vmatpush1.msra.mxu0 0.0
    %752 = vmatprep.subr.mxu0 0.0
    %753 = vmatpush1.msra.mxu0 0.0
    %754 = vmatprep.subr.mxu0 0.0
    %755 = vmatpush1.msra.mxu0 0.0
    %756 = vmatprep.mubr.f32.mxu0 0.0
    %757 = vmatmul.mubr.f32.gmra.mrb[0].mxu0 %v687
    %v758 = vpop.f32.mrb[0].mxu0
    %v759 = vadd.f32 0.0, %v758
    %v760 = vpop.f32.mrb[0].mxu0
    %761 = vmatprep.mubr.f32.mxu0 0.0
    %762 = vmatmul.mubr.f32.gmra.mrb[0].mxu0 %v690
    %v763 = vpop.f32.mrb[0].mxu0
    %v764 = vadd.f32 0.0, %v763
    %v765 = vpop.f32.mrb[0].mxu0
    %766 = vdwg.mxu0
    %s767 = scalar_lea.vmem [#allocation8], 16
    %v768 = vld [vmem:[%s767] sm:$0xff]
    %v769 = vld [vmem:[%s767 + $0x8] sm:$0xff]
    %v771 = vsel %vm148, %v768, 0
    %v774 = vsel %vm148, %v769, 0
    %776 = vmatprep.subr.mxu0 0.0
    %777 = vmatpush1.msra.mxu0 %v680
    %778 = vmatprep.subr.mxu0 0.0
    %779 = vmatpush1.msra.mxu0 %v681
    %780 = vmatprep.subr.mxu0 0.0
    %781 = vmatpush1.msra.mxu0 %v682
    %782 = vmatprep.subr.mxu0 0.0
    %783 = vmatpush1.msra.mxu0 %v683
    %784 = vmatprep.subr.mxu0 0.0
    %785 = vmatpush1.msra.mxu0 0.0
    %786 = vmatprep.subr.mxu0 0.0
    %787 = vmatpush1.msra.mxu0 0.0
    %788 = vmatprep.subr.mxu0 0.0
    %789 = vmatpush1.msra.mxu0 0.0
    %790 = vmatprep.subr.mxu0 0.0
    %791 = vmatpush1.msra.mxu0 0.0
    %792 = vmatprep.subr.mxu0 0.0
    %793 = vmatpush1.msra.mxu0 0.0
    %794 = vmatprep.subr.mxu0 0.0
    %795 = vmatpush1.msra.mxu0 0.0
    %796 = vmatprep.subr.mxu0 0.0
    %797 = vmatpush1.msra.mxu0 0.0
    %798 = vmatprep.subr.mxu0 0.0
    %799 = vmatpush1.msra.mxu0 0.0
    %800 = vmatprep.subr.mxu0 0.0
    %801 = vmatpush1.msra.mxu0 0.0
    %802 = vmatprep.subr.mxu0 0.0
    %803 = vmatpush1.msra.mxu0 0.0
    %804 = vmatprep.subr.mxu0 0.0
    %805 = vmatpush1.msra.mxu0 0.0
    %806 = vmatprep.subr.mxu0 0.0
    %807 = vmatpush1.msra.mxu0 0.0
    %808 = vmatprep.subr.mxu0 0.0
    %809 = vmatpush1.msra.mxu0 0.0
    %810 = vmatprep.subr.mxu0 0.0
    %811 = vmatpush1.msra.mxu0 0.0
    %812 = vmatprep.subr.mxu0 0.0
    %813 = vmatpush1.msra.mxu0 0.0
    %814 = vmatprep.subr.mxu0 0.0
    %815 = vmatpush1.msra.mxu0 0.0
    %816 = vmatprep.subr.mxu0 0.0
    %817 = vmatpush1.msra.mxu0 0.0
    %818 = vmatprep.subr.mxu0 0.0
    %819 = vmatpush1.msra.mxu0 0.0
    %820 = vmatprep.subr.mxu0 0.0
    %821 = vmatpush1.msra.mxu0 0.0
    %822 = vmatprep.subr.mxu0 0.0
    %823 = vmatpush1.msra.mxu0 0.0
    %824 = vmatprep.subr.mxu0 0.0
    %825 = vmatpush1.msra.mxu0 0.0
    %826 = vmatprep.subr.mxu0 0.0
    %827 = vmatpush1.msra.mxu0 0.0
    %828 = vmatprep.subr.mxu0 0.0
    %829 = vmatpush1.msra.mxu0 0.0
    %830 = vmatprep.subr.mxu0 0.0
    %831 = vmatpush1.msra.mxu0 0.0
    %832 = vmatprep.subr.mxu0 0.0
    %833 = vmatpush1.msra.mxu0 0.0
    %834 = vmatprep.subr.mxu0 0.0
    %835 = vmatpush1.msra.mxu0 0.0
    %836 = vmatprep.subr.mxu0 0.0
    %837 = vmatpush1.msra.mxu0 0.0
    %838 = vmatprep.subr.mxu0 0.0
    %839 = vmatpush1.msra.mxu0 0.0
    %840 = vmatprep.mubr.f32.mxu0 0.0
    %841 = vmatmul.mubr.f32.gmra.mrb[0].mxu0 %v771
    %v842 = vpop.f32.mrb[0].mxu0
    %v843 = vadd.f32 0.0, %v842
    %v844 = vpop.f32.mrb[0].mxu0
    %845 = vmatprep.mubr.f32.mxu0 0.0
    %846 = vmatmul.mubr.f32.gmra.mrb[0].mxu0 %v774
    %v847 = vpop.f32.mrb[0].mxu0
    %v848 = vadd.f32 0.0, %v847
    %v849 = vpop.f32.mrb[0].mxu0
    %850 = vdwg.mxu0
    %v851 = vmax.f32 %v759, %v843
    %v852 = vmax.f32 %v764, %v848
    %s853 = scalar_lea.vmem [#allocation11], 64
    %v854 = vld [vmem:[%s853] sm:$0xff]
    %v855 = vld [vmem:[%s853 + $0x8] sm:$0xff]
    %v856 = vld [vmem:[%s853 + $0x10] sm:$0xff]
    %v857 = vld [vmem:[%s853 + $0x18] sm:$0xff]
    %v858 = vld [vmem:[%s853 + $0x20] sm:$0xff]
    %v859 = vld [vmem:[%s853 + $0x28] sm:$0xff]
    %v860 = vld [vmem:[%s853 + $0x30] sm:$0xff]
    %v861 = vld [vmem:[%s853 + $0x38] sm:$0xff]
    %v862 = vld [vmem:[#allocation10] sm:$0xff]
    %v863 = vld [vmem:[#allocation10 + $0x8] sm:$0xff]
    %v865 = vsel %vm248, %v862, 0
    %v868 = vsel %vm248, %v863, 0
    %870 = vmatprep.subr.mxu0 0.0
    %871 = vmatpush1.msra.mxu0 %v851
    %872 = vmatprep.subr.mxu0 0.0
    %873 = vmatpush1.msra.mxu0 %v852
    %874 = vmatprep.subr.mxu0 0.0
    %875 = vmatpush1.msra.mxu0 0.0
    %876 = vmatprep.subr.mxu0 0.0
    %877 = vmatpush1.msra.mxu0 0.0
    %878 = vmatprep.subr.mxu0 0.0
    %879 = vmatpush1.msra.mxu0 0.0
    %880 = vmatprep.subr.mxu0 0.0
    %881 = vmatpush1.msra.mxu0 0.0
    %882 = vmatprep.subr.mxu0 0.0
    %883 = vmatpush1.msra.mxu0 0.0
    %884 = vmatprep.subr.mxu0 0.0
    %885 = vmatpush1.msra.mxu0 0.0
    %886 = vmatprep.subr.mxu0 0.0
    %887 = vmatpush1.msra.mxu0 0.0
    %888 = vmatprep.subr.mxu0 0.0
    %889 = vmatpush1.msra.mxu0 0.0
    %890 = vmatprep.subr.mxu0 0.0
    %891 = vmatpush1.msra.mxu0 0.0
    %892 = vmatprep.subr.mxu0 0.0
    %893 = vmatpush1.msra.mxu0 0.0
    %894 = vmatprep.subr.mxu0 0.0
    %895 = vmatpush1.msra.mxu0 0.0
    %896 = vmatprep.subr.mxu0 0.0
    %897 = vmatpush1.msra.mxu0 0.0
    %898 = vmatprep.subr.mxu0 0.0
    %899 = vmatpush1.msra.mxu0 0.0
    %900 = vmatprep.subr.mxu0 0.0
    %901 = vmatpush1.msra.mxu0 0.0
    %902 = vmatprep.subr.mxu0 0.0
    %903 = vmatpush1.msra.mxu0 0.0
    %904 = vmatprep.subr.mxu0 0.0
    %905 = vmatpush1.msra.mxu0 0.0
    %906 = vmatprep.subr.mxu0 0.0
    %907 = vmatpush1.msra.mxu0 0.0
    %908 = vmatprep.subr.mxu0 0.0
    %909 = vmatpush1.msra.mxu0 0.0
    %910 = vmatprep.subr.mxu0 0.0
    %911 = vmatpush1.msra.mxu0 0.0
    %912 = vmatprep.subr.mxu0 0.0
    %913 = vmatpush1.msra.mxu0 0.0
    %914 = vmatprep.subr.mxu0 0.0
    %915 = vmatpush1.msra.mxu0 0.0
    %916 = vmatprep.subr.mxu0 0.0
    %917 = vmatpush1.msra.mxu0 0.0
    %918 = vmatprep.subr.mxu0 0.0
    %919 = vmatpush1.msra.mxu0 0.0
    %920 = vmatprep.subr.mxu0 0.0
    %921 = vmatpush1.msra.mxu0 0.0
    %922 = vmatprep.subr.mxu0 0.0
    %923 = vmatpush1.msra.mxu0 0.0
    %924 = vmatprep.subr.mxu0 0.0
    %925 = vmatpush1.msra.mxu0 0.0
    %926 = vmatprep.subr.mxu0 0.0
    %927 = vmatpush1.msra.mxu0 0.0
    %928 = vmatprep.subr.mxu0 0.0
    %929 = vmatpush1.msra.mxu0 0.0
    %930 = vmatprep.subr.mxu0 0.0
    %931 = vmatpush1.msra.mxu0 0.0
    %932 = vmatprep.subr.mxu0 0.0
    %933 = vmatpush1.msra.mxu0 0.0
    %934 = vmatprep.mubr.f32.mxu0 0.0
    %935 = vmatmul.mubr.f32.gmra.mrb[0].mxu0 %v865
    %v936 = vpop.f32.mrb[0].mxu0
    %v937 = vadd.f32 0.0, %v936
    %v938 = vpop.f32.mrb[0].mxu0
    %939 = vmatprep.mubr.f32.mxu0 0.0
    %940 = vmatmul.mubr.f32.gmra.mrb[0].mxu0 %v868
    %v941 = vpop.f32.mrb[0].mxu0
    %v942 = vadd.f32 0.0, %v941
    %v943 = vpop.f32.mrb[0].mxu0
    %944 = vdwg.mxu0
    %v945 = vld [vmem:[#allocation11] sm:$0xff]
    %v946 = vld [vmem:[#allocation11 + $0x8] sm:$0xff]
    %v947 = vld [vmem:[#allocation11 + $0x10] sm:$0xff]
    %v948 = vld [vmem:[#allocation11 + $0x18] sm:$0xff]
    %v949 = vld [vmem:[#allocation11 + $0x20] sm:$0xff]
    %v950 = vld [vmem:[#allocation11 + $0x28] sm:$0xff]
    %v951 = vld [vmem:[#allocation11 + $0x30] sm:$0xff]
    %v952 = vld [vmem:[#allocation11 + $0x38] sm:$0xff]
    %vm953 = vcmask 523264
    %v955 = vsel %vm953, %v937, 0
    %v958 = vsel %vm953, %v942, 0
    %960 = vmatprep.subr.mxu0 0.0
    %961 = vmatpush1.msra.mxu0 %v945
    %962 = vmatprep.subr.mxu0 0.0
    %963 = vmatpush1.msra.mxu0 %v946
    %964 = vmatprep.subr.mxu0 0.0
    %965 = vmatpush1.msra.mxu0 %v947
    %966 = vmatprep.subr.mxu0 0.0
    %967 = vmatpush1.msra.mxu0 %v948
    %968 = vmatprep.subr.mxu0 0.0
    %969 = vmatpush1.msra.mxu0 %v949
    %970 = vmatprep.subr.mxu0 0.0
    %971 = vmatpush1.msra.mxu0 %v950
    %972 = vmatprep.subr.mxu0 0.0
    %973 = vmatpush1.msra.mxu0 %v951
    %974 = vmatprep.subr.mxu0 0.0
    %975 = vmatpush1.msra.mxu0 %v952
    %976 = vmatprep.subr.mxu0 0.0
    %977 = vmatpush1.msra.mxu0 0.0
    %978 = vmatprep.subr.mxu0 0.0
    %979 = vmatpush1.msra.mxu0 0.0
    %980 = vmatprep.subr.mxu0 0.0
    %981 = vmatpush1.msra.mxu0 0.0
    %982 = vmatprep.subr.mxu0 0.0
    %983 = vmatpush1.msra.mxu0 0.0
    %984 = vmatprep.subr.mxu0 0.0
    %985 = vmatpush1.msra.mxu0 0.0
    %986 = vmatprep.subr.mxu0 0.0
    %987 = vmatpush1.msra.mxu0 0.0
    %988 = vmatprep.subr.mxu0 0.0
    %989 = vmatpush1.msra.mxu0 0.0
    %990 = vmatprep.subr.mxu0 0.0
    %991 = vmatpush1.msra.mxu0 0.0
    %992 = vmatprep.subr.mxu0 0.0
    %993 = vmatpush1.msra.mxu0 0.0
    %994 = vmatprep.subr.mxu0 0.0
    %995 = vmatpush1.msra.mxu0 0.0
    %996 = vmatprep.subr.mxu0 0.0
    %997 = vmatpush1.msra.mxu0 0.0
    %998 = vmatprep.subr.mxu0 0.0
    %999 = vmatpush1.msra.mxu0 0.0
    %1000 = vmatprep.subr.mxu0 0.0
    %1001 = vmatpush1.msra.mxu0 0.0
    %1002 = vmatprep.subr.mxu0 0.0
    %1003 = vmatpush1.msra.mxu0 0.0
    %1004 = vmatprep.subr.mxu0 0.0
    %1005 = vmatpush1.msra.mxu0 0.0
    %1006 = vmatprep.subr.mxu0 0.0
    %1007 = vmatpush1.msra.mxu0 0.0
    %1008 = vmatprep.subr.mxu0 0.0
    %1009 = vmatpush1.msra.mxu0 0.0
    %1010 = vmatprep.subr.mxu0 0.0
    %1011 = vmatpush1.msra.mxu0 0.0
    %1012 = vmatprep.subr.mxu0 0.0
    %1013 = vmatpush1.msra.mxu0 0.0
    %1014 = vmatprep.subr.mxu0 0.0
    %1015 = vmatpush1.msra.mxu0 0.0
    %1016 = vmatprep.subr.mxu0 0.0
    %1017 = vmatpush1.msra.mxu0 0.0
    %1018 = vmatprep.subr.mxu0 0.0
    %1019 = vmatpush1.msra.mxu0 0.0
    %1020 = vmatprep.subr.mxu0 0.0
    %1021 = vmatpush1.msra.mxu0 0.0
    %1022 = vmatprep.subr.mxu0 0.0
    %1023 = vmatpush1.msra.mxu0 0.0
    %1024 = vmatprep.mubr.f32.mxu0 0.0
    %1025 = vmatmul.mubr.f32.gmra.mrb[0].mxu0 %v955
    %v1026 = vpop.f32.mrb[0].mxu0
    %v1027 = vadd.f32 0.0, %v1026
    %v1028 = vpop.f32.mrb[0].mxu0
    %1029 = vmatprep.mubr.f32.mxu0 0.0
    %1030 = vmatmul.mubr.f32.gmra.mrb[0].mxu0 %v958
    %v1031 = vpop.f32.mrb[0].mxu0
    %v1032 = vadd.f32 0.0, %v1031
    %v1033 = vpop.f32.mrb[0].mxu0
    %1034 = vdwg.mxu0
    %v1036 = vsel %vm953, %v851, 0
    %v1039 = vsel %vm953, %v852, 0
    %1041 = vmatprep.subr.mxu0 0.0
    %1042 = vmatpush1.msra.mxu0 %v854
    %1043 = vmatprep.subr.mxu0 0.0
    %1044 = vmatpush1.msra.mxu0 %v855
    %1045 = vmatprep.subr.mxu0 0.0
    %1046 = vmatpush1.msra.mxu0 %v856
    %1047 = vmatprep.subr.mxu0 0.0
    %1048 = vmatpush1.msra.mxu0 %v857
    %1049 = vmatprep.subr.mxu0 0.0
    %1050 = vmatpush1.msra.mxu0 %v858
    %1051 = vmatprep.subr.mxu0 0.0
    %1052 = vmatpush1.msra.mxu0 %v859
    %1053 = vmatprep.subr.mxu0 0.0
    %1054 = vmatpush1.msra.mxu0 %v860
    %1055 = vmatprep.subr.mxu0 0.0
    %1056 = vmatpush1.msra.mxu0 %v861
    %1057 = vmatprep.subr.mxu0 0.0
    %1058 = vmatpush1.msra.mxu0 0.0
    %1059 = vmatprep.subr.mxu0 0.0
    %1060 = vmatpush1.msra.mxu0 0.0
    %1061 = vmatprep.subr.mxu0 0.0
    %1062 = vmatpush1.msra.mxu0 0.0
    %1063 = vmatprep.subr.mxu0 0.0
    %1064 = vmatpush1.msra.mxu0 0.0
    %1065 = vmatprep.subr.mxu0 0.0
    %1066 = vmatpush1.msra.mxu0 0.0
    %1067 = vmatprep.subr.mxu0 0.0
    %1068 = vmatpush1.msra.mxu0 0.0
    %1069 = vmatprep.subr.mxu0 0.0
    %1070 = vmatpush1.msra.mxu0 0.0
    %1071 = vmatprep.subr.mxu0 0.0
    %1072 = vmatpush1.msra.mxu0 0.0
    %1073 = vmatprep.subr.mxu0 0.0
    %1074 = vmatpush1.msra.mxu0 0.0
    %1075 = vmatprep.subr.mxu0 0.0
    %1076 = vmatpush1.msra.mxu0 0.0
    %1077 = vmatprep.subr.mxu0 0.0
    %1078 = vmatpush1.msra.mxu0 0.0
    %1079 = vmatprep.subr.mxu0 0.0
    %1080 = vmatpush1.msra.mxu0 0.0
    %1081 = vmatprep.subr.mxu0 0.0
    %1082 = vmatpush1.msra.mxu0 0.0
    %1083 = vmatprep.subr.mxu0 0.0
    %1084 = vmatpush1.msra.mxu0 0.0
    %1085 = vmatprep.subr.mxu0 0.0
    %1086 = vmatpush1.msra.mxu0 0.0
    %1087 = vmatprep.subr.mxu0 0.0
    %1088 = vmatpush1.msra.mxu0 0.0
    %1089 = vmatprep.subr.mxu0 0.0
    %1090 = vmatpush1.msra.mxu0 0.0
    %1091 = vmatprep.subr.mxu0 0.0
    %1092 = vmatpush1.msra.mxu0 0.0
    %1093 = vmatprep.subr.mxu0 0.0
    %1094 = vmatpush1.msra.mxu0 0.0
    %1095 = vmatprep.subr.mxu0 0.0
    %1096 = vmatpush1.msra.mxu0 0.0
    %1097 = vmatprep.subr.mxu0 0.0
    %1098 = vmatpush1.msra.mxu0 0.0
    %1099 = vmatprep.subr.mxu0 0.0
    %1100 = vmatpush1.msra.mxu0 0.0
    %1101 = vmatprep.subr.mxu0 0.0
    %1102 = vmatpush1.msra.mxu0 0.0
    %1103 = vmatprep.subr.mxu0 0.0
    %1104 = vmatpush1.msra.mxu0 0.0
    %1105 = vmatprep.mubr.f32.mxu0 0.0
    %1106 = vmatmul.mubr.f32.gmra.mrb[0].mxu0 %v1036
    %v1107 = vpop.f32.mrb[0].mxu0
    %v1108 = vadd.f32 %v1027, %v1107
    %v1109 = vpop.f32.mrb[0].mxu0
    %1110 = vmatprep.mubr.f32.mxu0 0.0
    %1111 = vmatmul.mubr.f32.gmra.mrb[0].mxu0 %v1039
    %v1112 = vpop.f32.mrb[0].mxu0
    %v1113 = vadd.f32 %v1032, %v1112
    %v1114 = vpop.f32.mrb[0].mxu0
    %1115 = vdwg.mxu0
    %s1116 = scalar_lea.vmem [#allocation10], 16
    %v1117 = vld [vmem:[%s1116] sm:$0xff]
    %v1118 = vld [vmem:[%s1116 + $0x8] sm:$0xff]
    %v1120 = vsel %vm248, %v1117, 0
    %v1123 = vsel %vm248, %v1118, 0
    %1125 = vmatprep.subr.mxu0 0.0
    %1126 = vmatpush1.msra.mxu0 %v851
    %1127 = vmatprep.subr.mxu0 0.0
    %1128 = vmatpush1.msra.mxu0 %v852
    %1129 = vmatprep.subr.mxu0 0.0
    %1130 = vmatpush1.msra.mxu0 0.0
    %1131 = vmatprep.subr.mxu0 0.0
    %1132 = vmatpush1.msra.mxu0 0.0
    %1133 = vmatprep.subr.mxu0 0.0
    %1134 = vmatpush1.msra.mxu0 0.0
    %1135 = vmatprep.subr.mxu0 0.0
    %1136 = vmatpush1.msra.mxu0 0.0
    %1137 = vmatprep.subr.mxu0 0.0
    %1138 = vmatpush1.msra.mxu0 0.0
    %1139 = vmatprep.subr.mxu0 0.0
    %1140 = vmatpush1.msra.mxu0 0.0
    %1141 = vmatprep.subr.mxu0 0.0
    %1142 = vmatpush1.msra.mxu0 0.0
    %1143 = vmatprep.subr.mxu0 0.0
    %1144 = vmatpush1.msra.mxu0 0.0
    %1145 = vmatprep.subr.mxu0 0.0
    %1146 = vmatpush1.msra.mxu0 0.0
    %1147 = vmatprep.subr.mxu0 0.0
    %1148 = vmatpush1.msra.mxu0 0.0
    %1149 = vmatprep.subr.mxu0 0.0
    %1150 = vmatpush1.msra.mxu0 0.0
    %1151 = vmatprep.subr.mxu0 0.0
    %1152 = vmatpush1.msra.mxu0 0.0
    %1153 = vmatprep.subr.mxu0 0.0
    %1154 = vmatpush1.msra.mxu0 0.0
    %1155 = vmatprep.subr.mxu0 0.0
    %1156 = vmatpush1.msra.mxu0 0.0
    %1157 = vmatprep.subr.mxu0 0.0
    %1158 = vmatpush1.msra.mxu0 0.0
    %1159 = vmatprep.subr.mxu0 0.0
    %1160 = vmatpush1.msra.mxu0 0.0
    %1161 = vmatprep.subr.mxu0 0.0
    %1162 = vmatpush1.msra.mxu0 0.0
    %1163 = vmatprep.subr.mxu0 0.0
    %1164 = vmatpush1.msra.mxu0 0.0
    %1165 = vmatprep.subr.mxu0 0.0
    %1166 = vmatpush1.msra.mxu0 0.0
    %1167 = vmatprep.subr.mxu0 0.0
    %1168 = vmatpush1.msra.mxu0 0.0
    %1169 = vmatprep.subr.mxu0 0.0
    %1170 = vmatpush1.msra.mxu0 0.0
    %1171 = vmatprep.subr.mxu0 0.0
    %1172 = vmatpush1.msra.mxu0 0.0
    %1173 = vmatprep.subr.mxu0 0.0
    %1174 = vmatpush1.msra.mxu0 0.0
    %1175 = vmatprep.subr.mxu0 0.0
    %1176 = vmatpush1.msra.mxu0 0.0
    %1177 = vmatprep.subr.mxu0 0.0
    %1178 = vmatpush1.msra.mxu0 0.0
    %1179 = vmatprep.subr.mxu0 0.0
    %1180 = vmatpush1.msra.mxu0 0.0
    %1181 = vmatprep.subr.mxu0 0.0
    %1182 = vmatpush1.msra.mxu0 0.0
    %1183 = vmatprep.subr.mxu0 0.0
    %1184 = vmatpush1.msra.mxu0 0.0
    %1185 = vmatprep.subr.mxu0 0.0
    %1186 = vmatpush1.msra.mxu0 0.0
    %1187 = vmatprep.subr.mxu0 0.0
    %1188 = vmatpush1.msra.mxu0 0.0
    %1189 = vmatprep.mubr.f32.mxu0 0.0
    %1190 = vmatmul.mubr.f32.gmra.mrb[0].mxu0 %v1120
    %v1191 = vpop.f32.mrb[0].mxu0
    %v1192 = vadd.f32 0.0, %v1191
    %v1193 = vpop.f32.mrb[0].mxu0
    %1194 = vmatprep.mubr.f32.mxu0 0.0
    %1195 = vmatmul.mubr.f32.gmra.mrb[0].mxu0 %v1123
    %v1196 = vpop.f32.mrb[0].mxu0
    %v1197 = vadd.f32 0.0, %v1196
    %v1198 = vpop.f32.mrb[0].mxu0
    %1199 = vdwg.mxu0
    %s1200 = scalar_lea.vmem [#allocation11], 128
    %v1201 = vld [vmem:[%s1200] sm:$0xff]
    %v1202 = vld [vmem:[%s1200 + $0x8] sm:$0xff]
    %v1203 = vld [vmem:[%s1200 + $0x10] sm:$0xff]
    %v1204 = vld [vmem:[%s1200 + $0x18] sm:$0xff]
    %v1205 = vld [vmem:[%s1200 + $0x20] sm:$0xff]
    %v1206 = vld [vmem:[%s1200 + $0x28] sm:$0xff]
    %v1207 = vld [vmem:[%s1200 + $0x30] sm:$0xff]
    %v1208 = vld [vmem:[%s1200 + $0x38] sm:$0xff]
    %v1210 = vsel %vm953, %v1192, 0
    %v1213 = vsel %vm953, %v1197, 0
    %1215 = vmatprep.subr.mxu0 0.0
    %1216 = vmatpush1.msra.mxu0 %v1201
    %1217 = vmatprep.subr.mxu0 0.0
    %1218 = vmatpush1.msra.mxu0 %v1202
    %1219 = vmatprep.subr.mxu0 0.0
    %1220 = vmatpush1.msra.mxu0 %v1203
    %1221 = vmatprep.subr.mxu0 0.0
    %1222 = vmatpush1.msra.mxu0 %v1204
    %1223 = vmatprep.subr.mxu0 0.0
    %1224 = vmatpush1.msra.mxu0 %v1205
    %1225 = vmatprep.subr.mxu0 0.0
    %1226 = vmatpush1.msra.mxu0 %v1206
    %1227 = vmatprep.subr.mxu0 0.0
    %1228 = vmatpush1.msra.mxu0 %v1207
    %1229 = vmatprep.subr.mxu0 0.0
    %1230 = vmatpush1.msra.mxu0 %v1208
    %1231 = vmatprep.subr.mxu0 0.0
    %1232 = vmatpush1.msra.mxu0 0.0
    %1233 = vmatprep.subr.mxu0 0.0
    %1234 = vmatpush1.msra.mxu0 0.0
    %1235 = vmatprep.subr.mxu0 0.0
    %1236 = vmatpush1.msra.mxu0 0.0
    %1237 = vmatprep.subr.mxu0 0.0
    %1238 = vmatpush1.msra.mxu0 0.0
    %1239 = vmatprep.subr.mxu0 0.0
    %1240 = vmatpush1.msra.mxu0 0.0
    %1241 = vmatprep.subr.mxu0 0.0
    %1242 = vmatpush1.msra.mxu0 0.0
    %1243 = vmatprep.subr.mxu0 0.0
    %1244 = vmatpush1.msra.mxu0 0.0
    %1245 = vmatprep.subr.mxu0 0.0
    %1246 = vmatpush1.msra.mxu0 0.0
    %1247 = vmatprep.subr.mxu0 0.0
    %1248 = vmatpush1.msra.mxu0 0.0
    %1249 = vmatprep.subr.mxu0 0.0
    %1250 = vmatpush1.msra.mxu0 0.0
    %1251 = vmatprep.subr.mxu0 0.0
    %1252 = vmatpush1.msra.mxu0 0.0
    %1253 = vmatprep.subr.mxu0 0.0
    %1254 = vmatpush1.msra.mxu0 0.0
    %1255 = vmatprep.subr.mxu0 0.0
    %1256 = vmatpush1.msra.mxu0 0.0
    %1257 = vmatprep.subr.mxu0 0.0
    %1258 = vmatpush1.msra.mxu0 0.0
    %1259 = vmatprep.subr.mxu0 0.0
    %1260 = vmatpush1.msra.mxu0 0.0
    %1261 = vmatprep.subr.mxu0 0.0
    %1262 = vmatpush1.msra.mxu0 0.0
    %1263 = vmatprep.subr.mxu0 0.0
    %1264 = vmatpush1.msra.mxu0 0.0
    %1265 = vmatprep.subr.mxu0 0.0
    %1266 = vmatpush1.msra.mxu0 0.0
    %1267 = vmatprep.subr.mxu0 0.0
    %1268 = vmatpush1.msra.mxu0 0.0
    %1269 = vmatprep.subr.mxu0 0.0
    %1270 = vmatpush1.msra.mxu0 0.0
    %1271 = vmatprep.subr.mxu0 0.0
    %1272 = vmatpush1.msra.mxu0 0.0
    %1273 = vmatprep.subr.mxu0 0.0
    %1274 = vmatpush1.msra.mxu0 0.0
    %1275 = vmatprep.subr.mxu0 0.0
    %1276 = vmatpush1.msra.mxu0 0.0
    %1277 = vmatprep.subr.mxu0 0.0
    %1278 = vmatpush1.msra.mxu0 0.0
    %1279 = vmatprep.mubr.f32.mxu0 0.0
    %1280 = vmatmul.mubr.f32.gmra.mrb[0].mxu0 %v1210
    %v1281 = vpop.f32.mrb[0].mxu0
    %v1282 = vadd.f32 0.0, %v1281
    %v1283 = vpop.f32.mrb[0].mxu0
    %1284 = vmatprep.mubr.f32.mxu0 0.0
    %1285 = vmatmul.mubr.f32.gmra.mrb[0].mxu0 %v1213
    %v1286 = vpop.f32.mrb[0].mxu0
    %v1287 = vadd.f32 0.0, %v1286
    %v1288 = vpop.f32.mrb[0].mxu0
    %1289 = vdwg.mxu0
    %v1290 = vadd.f32 %v1108, %v1282
    %v1291 = vadd.f32 %v1113, %v1287
    %v1292 = vld [vmem:[%s7] sm:$0x1]
    %v1294 = vlaneseq
    %v1295 = vshrl.u32 %v1294, 7
    %v1296 = vsub.s32 0, %v1295
    %v1297 = vrot.slane %v1292, %v1296
    %v1299 = vadd.f32 %v1290, %v1297
    %v1300 = vadd.f32 %v1291, %v1297
    %v1301 = vmax.f32 %v1299, 0.0
    %v1302 = vmax.f32 %v1300, 0.0
    %1305 = vrot.lane.b32.xlu0 %v1301, 96
    %v1306 = vpop.permute.xlu0 %1305
    %1307 = vrot.lane.b32.xlu0 %v1302, 96
    %v1308 = vpop.permute.xlu0 %1307
    %v1311 = vmax.f32 %v1301, %v1306
    %v1312 = vmax.f32 %v1302, %v1308
    %v1313 = vld [vmem:[%s8] sm:$0xff]
    %v1315 = vsel %vm248, %v1313, 0
    %1317 = vmatprep.subr.mxu0 0.0
    %1318 = vmatpush1.msra.mxu0 %v1311
    %1319 = vmatprep.subr.mxu0 0.0
    %1320 = vmatpush1.msra.mxu0 %v1312
    %1321 = vmatprep.subr.mxu0 0.0
    %1322 = vmatpush1.msra.mxu0 0.0
    %1323 = vmatprep.subr.mxu0 0.0
    %1324 = vmatpush1.msra.mxu0 0.0
    %1325 = vmatprep.subr.mxu0 0.0
    %1326 = vmatpush1.msra.mxu0 0.0
    %1327 = vmatprep.subr.mxu0 0.0
    %1328 = vmatpush1.msra.mxu0 0.0
    %1329 = vmatprep.subr.mxu0 0.0
    %1330 = vmatpush1.msra.mxu0 0.0
    %1331 = vmatprep.subr.mxu0 0.0
    %1332 = vmatpush1.msra.mxu0 0.0
    %1333 = vmatprep.subr.mxu0 0.0
    %1334 = vmatpush1.msra.mxu0 0.0
    %1335 = vmatprep.subr.mxu0 0.0
    %1336 = vmatpush1.msra.mxu0 0.0
    %1337 = vmatprep.subr.mxu0 0.0
    %1338 = vmatpush1.msra.mxu0 0.0
    %1339 = vmatprep.subr.mxu0 0.0
    %1340 = vmatpush1.msra.mxu0 0.0
    %1341 = vmatprep.subr.mxu0 0.0
    %1342 = vmatpush1.msra.mxu0 0.0
    %1343 = vmatprep.subr.mxu0 0.0
    %1344 = vmatpush1.msra.mxu0 0.0
    %1345 = vmatprep.subr.mxu0 0.0
    %1346 = vmatpush1.msra.mxu0 0.0
    %1347 = vmatprep.subr.mxu0 0.0
    %1348 = vmatpush1.msra.mxu0 0.0
    %1349 = vmatprep.subr.mxu0 0.0
    %1350 = vmatpush1.msra.mxu0 0.0
    %1351 = vmatprep.subr.mxu0 0.0
    %1352 = vmatpush1.msra.mxu0 0.0
    %1353 = vmatprep.subr.mxu0 0.0
    %1354 = vmatpush1.msra.mxu0 0.0
    %1355 = vmatprep.subr.mxu0 0.0
    %1356 = vmatpush1.msra.mxu0 0.0
    %1357 = vmatprep.subr.mxu0 0.0
    %1358 = vmatpush1.msra.mxu0 0.0
    %1359 = vmatprep.subr.mxu0 0.0
    %1360 = vmatpush1.msra.mxu0 0.0
    %1361 = vmatprep.subr.mxu0 0.0
    %1362 = vmatpush1.msra.mxu0 0.0
    %1363 = vmatprep.subr.mxu0 0.0
    %1364 = vmatpush1.msra.mxu0 0.0
    %1365 = vmatprep.subr.mxu0 0.0
    %1366 = vmatpush1.msra.mxu0 0.0
    %1367 = vmatprep.subr.mxu0 0.0
    %1368 = vmatpush1.msra.mxu0 0.0
    %1369 = vmatprep.subr.mxu0 0.0
    %1370 = vmatpush1.msra.mxu0 0.0
    %1371 = vmatprep.subr.mxu0 0.0
    %1372 = vmatpush1.msra.mxu0 0.0
    %1373 = vmatprep.subr.mxu0 0.0
    %1374 = vmatpush1.msra.mxu0 0.0
    %1375 = vmatprep.subr.mxu0 0.0
    %1376 = vmatpush1.msra.mxu0 0.0
    %1377 = vmatprep.subr.mxu0 0.0
    %1378 = vmatpush1.msra.mxu0 0.0
    %1379 = vmatprep.subr.mxu0 0.0
    %1380 = vmatpush1.msra.mxu0 0.0
    %1381 = vmatprep.mubr.f32.mxu0 0.0
    %1382 = vmatmul.mubr.f32.gmra.mrb[0].mxu0 %v1315
    %v1383 = vpop.f32.mrb[0].mxu0
    %v1384 = vadd.f32 0.0, %v1383
    %v1385 = vpop.f32.mrb[0].mxu0
    %1386 = vdwg.mxu0
    %s1387 = scalar_lea.vmem %s8, 8
    %v1388 = vld [vmem:[%s1387] sm:$0xff]
    %v1390 = vsel %vm248, %v1388, 0
    %1392 = vmatprep.subr.mxu0 0.0
    %1393 = vmatpush1.msra.mxu0 %v1311
    %1394 = vmatprep.subr.mxu0 0.0
    %1395 = vmatpush1.msra.mxu0 %v1312
    %1396 = vmatprep.subr.mxu0 0.0
    %1397 = vmatpush1.msra.mxu0 0.0
    %1398 = vmatprep.subr.mxu0 0.0
    %1399 = vmatpush1.msra.mxu0 0.0
    %1400 = vmatprep.subr.mxu0 0.0
    %1401 = vmatpush1.msra.mxu0 0.0
    %1402 = vmatprep.subr.mxu0 0.0
    %1403 = vmatpush1.msra.mxu0 0.0
    %1404 = vmatprep.subr.mxu0 0.0
    %1405 = vmatpush1.msra.mxu0 0.0
    %1406 = vmatprep.subr.mxu0 0.0
    %1407 = vmatpush1.msra.mxu0 0.0
    %1408 = vmatprep.subr.mxu0 0.0
    %1409 = vmatpush1.msra.mxu0 0.0
    %1410 = vmatprep.subr.mxu0 0.0
    %1411 = vmatpush1.msra.mxu0 0.0
    %1412 = vmatprep.subr.mxu0 0.0
    %1413 = vmatpush1.msra.mxu0 0.0
    %1414 = vmatprep.subr.mxu0 0.0
    %1415 = vmatpush1.msra.mxu0 0.0
    %1416 = vmatprep.subr.mxu0 0.0
    %1417 = vmatpush1.msra.mxu0 0.0
    %1418 = vmatprep.subr.mxu0 0.0
    %1419 = vmatpush1.msra.mxu0 0.0
    %1420 = vmatprep.subr.mxu0 0.0
    %1421 = vmatpush1.msra.mxu0 0.0
    %1422 = vmatprep.subr.mxu0 0.0
    %1423 = vmatpush1.msra.mxu0 0.0
    %1424 = vmatprep.subr.mxu0 0.0
    %1425 = vmatpush1.msra.mxu0 0.0
    %1426 = vmatprep.subr.mxu0 0.0
    %1427 = vmatpush1.msra.mxu0 0.0
    %1428 = vmatprep.subr.mxu0 0.0
    %1429 = vmatpush1.msra.mxu0 0.0
    %1430 = vmatprep.subr.mxu0 0.0
    %1431 = vmatpush1.msra.mxu0 0.0
    %1432 = vmatprep.subr.mxu0 0.0
    %1433 = vmatpush1.msra.mxu0 0.0
    %1434 = vmatprep.subr.mxu0 0.0
    %1435 = vmatpush1.msra.mxu0 0.0
    %1436 = vmatprep.subr.mxu0 0.0
    %1437 = vmatpush1.msra.mxu0 0.0
    %1438 = vmatprep.subr.mxu0 0.0
    %1439 = vmatpush1.msra.mxu0 0.0
    %1440 = vmatprep.subr.mxu0 0.0
    %1441 = vmatpush1.msra.mxu0 0.0
    %1442 = vmatprep.subr.mxu0 0.0
    %1443 = vmatpush1.msra.mxu0 0.0
    %1444 = vmatprep.subr.mxu0 0.0
    %1445 = vmatpush1.msra.mxu0 0.0
    %1446 = vmatprep.subr.mxu0 0.0
    %1447 = vmatpush1.msra.mxu0 0.0
    %1448 = vmatprep.subr.mxu0 0.0
    %1449 = vmatpush1.msra.mxu0 0.0
    %1450 = vmatprep.subr.mxu0 0.0
    %1451 = vmatpush1.msra.mxu0 0.0
    %1452 = vmatprep.subr.mxu0 0.0
    %1453 = vmatpush1.msra.mxu0 0.0
    %1454 = vmatprep.subr.mxu0 0.0
    %1455 = vmatpush1.msra.mxu0 0.0
    %1456 = vmatprep.mubr.f32.mxu0 0.0
    %1457 = vmatmul.mubr.f32.gmra.mrb[0].mxu0 %v1390
    %v1458 = vpop.f32.mrb[0].mxu0
    %v1459 = vadd.f32 0.0, %v1458
    %v1460 = vpop.f32.mrb[0].mxu0
    %1461 = vdwg.mxu0
    %v1462 = vmax.f32 %v1384, %v1459
    %v1463 = vld [vmem:[%s9] sm:$0x3]
    %vm1464 = vcmask 64512
    %v1466 = vsel %vm1464, %v1463, 0
    %1468 = vmatprep.subr.mxu0 0.0
    %1469 = vmatpush1.msra.mxu0 %v1462
    %1470 = vmatprep.subr.mxu0 0.0
    %1471 = vmatpush1.msra.mxu0 0.0
    %1472 = vmatprep.subr.mxu0 0.0
    %1473 = vmatpush1.msra.mxu0 0.0
    %1474 = vmatprep.subr.mxu0 0.0
    %1475 = vmatpush1.msra.mxu0 0.0
    %1476 = vmatprep.subr.mxu0 0.0
    %1477 = vmatpush1.msra.mxu0 0.0
    %1478 = vmatprep.subr.mxu0 0.0
    %1479 = vmatpush1.msra.mxu0 0.0
    %1480 = vmatprep.subr.mxu0 0.0
    %1481 = vmatpush1.msra.mxu0 0.0
    %1482 = vmatprep.subr.mxu0 0.0
    %1483 = vmatpush1.msra.mxu0 0.0
    %1484 = vmatprep.subr.mxu0 0.0
    %1485 = vmatpush1.msra.mxu0 0.0
    %1486 = vmatprep.subr.mxu0 0.0
    %1487 = vmatpush1.msra.mxu0 0.0
    %1488 = vmatprep.subr.mxu0 0.0
    %1489 = vmatpush1.msra.mxu0 0.0
    %1490 = vmatprep.subr.mxu0 0.0
    %1491 = vmatpush1.msra.mxu0 0.0
    %1492 = vmatprep.subr.mxu0 0.0
    %1493 = vmatpush1.msra.mxu0 0.0
    %1494 = vmatprep.subr.mxu0 0.0
    %1495 = vmatpush1.msra.mxu0 0.0
    %1496 = vmatprep.subr.mxu0 0.0
    %1497 = vmatpush1.msra.mxu0 0.0
    %1498 = vmatprep.subr.mxu0 0.0
    %1499 = vmatpush1.msra.mxu0 0.0
    %1500 = vmatprep.subr.mxu0 0.0
    %1501 = vmatpush1.msra.mxu0 0.0
    %1502 = vmatprep.subr.mxu0 0.0
    %1503 = vmatpush1.msra.mxu0 0.0
    %1504 = vmatprep.subr.mxu0 0.0
    %1505 = vmatpush1.msra.mxu0 0.0
    %1506 = vmatprep.subr.mxu0 0.0
    %1507 = vmatpush1.msra.mxu0 0.0
    %1508 = vmatprep.subr.mxu0 0.0
    %1509 = vmatpush1.msra.mxu0 0.0
    %1510 = vmatprep.subr.mxu0 0.0
    %1511 = vmatpush1.msra.mxu0 0.0
    %1512 = vmatprep.subr.mxu0 0.0
    %1513 = vmatpush1.msra.mxu0 0.0
    %1514 = vmatprep.subr.mxu0 0.0
    %1515 = vmatpush1.msra.mxu0 0.0
    %1516 = vmatprep.subr.mxu0 0.0
    %1517 = vmatpush1.msra.mxu0 0.0
    %1518 = vmatprep.subr.mxu0 0.0
    %1519 = vmatpush1.msra.mxu0 0.0
    %1520 = vmatprep.subr.mxu0 0.0
    %1521 = vmatpush1.msra.mxu0 0.0
    %1522 = vmatprep.subr.mxu0 0.0
    %1523 = vmatpush1.msra.mxu0 0.0
    %1524 = vmatprep.subr.mxu0 0.0
    %1525 = vmatpush1.msra.mxu0 0.0
    %1526 = vmatprep.subr.mxu0 0.0
    %1527 = vmatpush1.msra.mxu0 0.0
    %1528 = vmatprep.subr.mxu0 0.0
    %1529 = vmatpush1.msra.mxu0 0.0
    %1530 = vmatprep.subr.mxu0 0.0
    %1531 = vmatpush1.msra.mxu0 0.0
    %1532 = vmatprep.mubr.f32.mxu0 0.0
    %1533 = vmatmul.mubr.f32.gmra.mrb[0].mxu0 %v1466
    %v1534 = vpop.f32.mrb[0].mxu0
    %v1535 = vadd.f32 0.0, %v1534
    %v1536 = vpop.f32.mrb[0].mxu0
    %1537 = vdwg.mxu0
    %v1538 = vld [vmem:[#allocation13] sm:$0xff]
    %v1539 = vld [vmem:[#allocation13 + $0x8] sm:$0xff]
    %v1540 = vld [vmem:[#allocation13 + $0x10] sm:$0xff]
    %v1541 = vld [vmem:[#allocation13 + $0x18] sm:$0xff]
    %s1542 = scalar_lea.vmem %s9, 2
    %v1543 = vld [vmem:[%s1542] sm:$0x3]
    %v1545 = vsel %vm1464, %v1543, 0
    %1547 = vmatprep.subr.mxu0 0.0
    %1548 = vmatpush1.msra.mxu0 %v1462
    %1549 = vmatprep.subr.mxu0 0.0
    %1550 = vmatpush1.msra.mxu0 0.0
    %1551 = vmatprep.subr.mxu0 0.0
    %1552 = vmatpush1.msra.mxu0 0.0
    %1553 = vmatprep.subr.mxu0 0.0
    %1554 = vmatpush1.msra.mxu0 0.0
    %1555 = vmatprep.subr.mxu0 0.0
    %1556 = vmatpush1.msra.mxu0 0.0
    %1557 = vmatprep.subr.mxu0 0.0
    %1558 = vmatpush1.msra.mxu0 0.0
    %1559 = vmatprep.subr.mxu0 0.0
    %1560 = vmatpush1.msra.mxu0 0.0
    %1561 = vmatprep.subr.mxu0 0.0
    %1562 = vmatpush1.msra.mxu0 0.0
    %1563 = vmatprep.subr.mxu0 0.0
    %1564 = vmatpush1.msra.mxu0 0.0
    %1565 = vmatprep.subr.mxu0 0.0
    %1566 = vmatpush1.msra.mxu0 0.0
    %1567 = vmatprep.subr.mxu0 0.0
    %1568 = vmatpush1.msra.mxu0 0.0
    %1569 = vmatprep.subr.mxu0 0.0
    %1570 = vmatpush1.msra.mxu0 0.0
    %1571 = vmatprep.subr.mxu0 0.0
    %1572 = vmatpush1.msra.mxu0 0.0
    %1573 = vmatprep.subr.mxu0 0.0
    %1574 = vmatpush1.msra.mxu0 0.0
    %1575 = vmatprep.subr.mxu0 0.0
    %1576 = vmatpush1.msra.mxu0 0.0
    %1577 = vmatprep.subr.mxu0 0.0
    %1578 = vmatpush1.msra.mxu0 0.0
    %1579 = vmatprep.subr.mxu0 0.0
    %1580 = vmatpush1.msra.mxu0 0.0
    %1581 = vmatprep.subr.mxu0 0.0
    %1582 = vmatpush1.msra.mxu0 0.0
    %1583 = vmatprep.subr.mxu0 0.0
    %1584 = vmatpush1.msra.mxu0 0.0
    %1585 = vmatprep.subr.mxu0 0.0
    %1586 = vmatpush1.msra.mxu0 0.0
    %1587 = vmatprep.subr.mxu0 0.0
    %1588 = vmatpush1.msra.mxu0 0.0
    %1589 = vmatprep.subr.mxu0 0.0
    %1590 = vmatpush1.msra.mxu0 0.0
    %1591 = vmatprep.subr.mxu0 0.0
    %1592 = vmatpush1.msra.mxu0 0.0
    %1593 = vmatprep.subr.mxu0 0.0
    %1594 = vmatpush1.msra.mxu0 0.0
    %1595 = vmatprep.subr.mxu0 0.0
    %1596 = vmatpush1.msra.mxu0 0.0
    %1597 = vmatprep.subr.mxu0 0.0
    %1598 = vmatpush1.msra.mxu0 0.0
    %1599 = vmatprep.subr.mxu0 0.0
    %1600 = vmatpush1.msra.mxu0 0.0
    %1601 = vmatprep.subr.mxu0 0.0
    %1602 = vmatpush1.msra.mxu0 0.0
    %1603 = vmatprep.subr.mxu0 0.0
    %1604 = vmatpush1.msra.mxu0 0.0
    %1605 = vmatprep.subr.mxu0 0.0
    %1606 = vmatpush1.msra.mxu0 0.0
    %1607 = vmatprep.subr.mxu0 0.0
    %1608 = vmatpush1.msra.mxu0 0.0
    %1609 = vmatprep.subr.mxu0 0.0
    %1610 = vmatpush1.msra.mxu0 0.0
    %1611 = vmatprep.mubr.f32.mxu0 0.0
    %1612 = vmatmul.mubr.f32.gmra.mrb[0].mxu0 %v1545
    %v1613 = vpop.f32.mrb[0].mxu0
    %v1614 = vadd.f32 0.0, %v1613
    %v1615 = vpop.f32.mrb[0].mxu0
    %1616 = vdwg.mxu0
    %s1617 = scalar_lea.vmem [#allocation13], 32
    %v1618 = vld [vmem:[%s1617] sm:$0xff]
    %v1619 = vld [vmem:[%s1617 + $0x8] sm:$0xff]
    %v1620 = vld [vmem:[%s1617 + $0x10] sm:$0xff]
    %v1621 = vld [vmem:[%s1617 + $0x18] sm:$0xff]
    %v1623 = vsel %vm148, %v1614, 0
    %1625 = vmatprep.subr.mxu0 0.0
    %1626 = vmatpush1.msra.mxu0 %v1618
    %1627 = vmatprep.subr.mxu0 0.0
    %1628 = vmatpush1.msra.mxu0 %v1619
    %1629 = vmatprep.subr.mxu0 0.0
    %1630 = vmatpush1.msra.mxu0 %v1620
    %1631 = vmatprep.subr.mxu0 0.0
    %1632 = vmatpush1.msra.mxu0 %v1621
    %1633 = vmatprep.subr.mxu0 0.0
    %1634 = vmatpush1.msra.mxu0 0.0
    %1635 = vmatprep.subr.mxu0 0.0
    %1636 = vmatpush1.msra.mxu0 0.0
    %1637 = vmatprep.subr.mxu0 0.0
    %1638 = vmatpush1.msra.mxu0 0.0
    %1639 = vmatprep.subr.mxu0 0.0
    %1640 = vmatpush1.msra.mxu0 0.0
    %1641 = vmatprep.subr.mxu0 0.0
    %1642 = vmatpush1.msra.mxu0 0.0
    %1643 = vmatprep.subr.mxu0 0.0
    %1644 = vmatpush1.msra.mxu0 0.0
    %1645 = vmatprep.subr.mxu0 0.0
    %1646 = vmatpush1.msra.mxu0 0.0
    %1647 = vmatprep.subr.mxu0 0.0
    %1648 = vmatpush1.msra.mxu0 0.0
    %1649 = vmatprep.subr.mxu0 0.0
    %1650 = vmatpush1.msra.mxu0 0.0
    %1651 = vmatprep.subr.mxu0 0.0
    %1652 = vmatpush1.msra.mxu0 0.0
    %1653 = vmatprep.subr.mxu0 0.0
    %1654 = vmatpush1.msra.mxu0 0.0
    %1655 = vmatprep.subr.mxu0 0.0
    %1656 = vmatpush1.msra.mxu0 0.0
    %1657 = vmatprep.subr.mxu0 0.0
    %1658 = vmatpush1.msra.mxu0 0.0
    %1659 = vmatprep.subr.mxu0 0.0
    %1660 = vmatpush1.msra.mxu0 0.0
    %1661 = vmatprep.subr.mxu0 0.0
    %1662 = vmatpush1.msra.mxu0 0.0
    %1663 = vmatprep.subr.mxu0 0.0
    %1664 = vmatpush1.msra.mxu0 0.0
    %1665 = vmatprep.subr.mxu0 0.0
    %1666 = vmatpush1.msra.mxu0 0.0
    %1667 = vmatprep.subr.mxu0 0.0
    %1668 = vmatpush1.msra.mxu0 0.0
    %1669 = vmatprep.subr.mxu0 0.0
    %1670 = vmatpush1.msra.mxu0 0.0
    %1671 = vmatprep.subr.mxu0 0.0
    %1672 = vmatpush1.msra.mxu0 0.0
    %1673 = vmatprep.subr.mxu0 0.0
    %1674 = vmatpush1.msra.mxu0 0.0
    %1675 = vmatprep.subr.mxu0 0.0
    %1676 = vmatpush1.msra.mxu0 0.0
    %1677 = vmatprep.subr.mxu0 0.0
    %1678 = vmatpush1.msra.mxu0 0.0
    %1679 = vmatprep.subr.mxu0 0.0
    %1680 = vmatpush1.msra.mxu0 0.0
    %1681 = vmatprep.subr.mxu0 0.0
    %1682 = vmatpush1.msra.mxu0 0.0
    %1683 = vmatprep.subr.mxu0 0.0
    %1684 = vmatpush1.msra.mxu0 0.0
    %1685 = vmatprep.subr.mxu0 0.0
    %1686 = vmatpush1.msra.mxu0 0.0
    %1687 = vmatprep.subr.mxu0 0.0
    %1688 = vmatpush1.msra.mxu0 0.0
    %1689 = vmatprep.mubr.f32.mxu0 0.0
    %1690 = vmatmul.mubr.f32.gmra.mrb[0].mxu0 %v1623
    %v1691 = vpop.f32.mrb[0].mxu0
    %v1692 = vadd.f32 0.0, %v1691
    %v1693 = vpop.f32.mrb[0].mxu0
    %1694 = vdwg.mxu0
    %v1696 = vsel %vm148, %v1535, 0
    %1698 = vmatprep.subr.mxu0 0.0
    %1699 = vmatpush1.msra.mxu0 %v1538
    %1700 = vmatprep.subr.mxu0 0.0
    %1701 = vmatpush1.msra.mxu0 %v1539
    %1702 = vmatprep.subr.mxu0 0.0
    %1703 = vmatpush1.msra.mxu0 %v1540
    %1704 = vmatprep.subr.mxu0 0.0
    %1705 = vmatpush1.msra.mxu0 %v1541
    %1706 = vmatprep.subr.mxu0 0.0
    %1707 = vmatpush1.msra.mxu0 0.0
    %1708 = vmatprep.subr.mxu0 0.0
    %1709 = vmatpush1.msra.mxu0 0.0
    %1710 = vmatprep.subr.mxu0 0.0
    %1711 = vmatpush1.msra.mxu0 0.0
    %1712 = vmatprep.subr.mxu0 0.0
    %1713 = vmatpush1.msra.mxu0 0.0
    %1714 = vmatprep.subr.mxu0 0.0
    %1715 = vmatpush1.msra.mxu0 0.0
    %1716 = vmatprep.subr.mxu0 0.0
    %1717 = vmatpush1.msra.mxu0 0.0
    %1718 = vmatprep.subr.mxu0 0.0
    %1719 = vmatpush1.msra.mxu0 0.0
    %1720 = vmatprep.subr.mxu0 0.0
    %1721 = vmatpush1.msra.mxu0 0.0
    %1722 = vmatprep.subr.mxu0 0.0
    %1723 = vmatpush1.msra.mxu0 0.0
    %1724 = vmatprep.subr.mxu0 0.0
    %1725 = vmatpush1.msra.mxu0 0.0
    %1726 = vmatprep.subr.mxu0 0.0
    %1727 = vmatpush1.msra.mxu0 0.0
    %1728 = vmatprep.subr.mxu0 0.0
    %1729 = vmatpush1.msra.mxu0 0.0
    %1730 = vmatprep.subr.mxu0 0.0
    %1731 = vmatpush1.msra.mxu0 0.0
    %1732 = vmatprep.subr.mxu0 0.0
    %1733 = vmatpush1.msra.mxu0 0.0
    %1734 = vmatprep.subr.mxu0 0.0
    %1735 = vmatpush1.msra.mxu0 0.0
    %1736 = vmatprep.subr.mxu0 0.0
    %1737 = vmatpush1.msra.mxu0 0.0
    %1738 = vmatprep.subr.mxu0 0.0
    %1739 = vmatpush1.msra.mxu0 0.0
    %1740 = vmatprep.subr.mxu0 0.0
    %1741 = vmatpush1.msra.mxu0 0.0
    %1742 = vmatprep.subr.mxu0 0.0
    %1743 = vmatpush1.msra.mxu0 0.0
    %1744 = vmatprep.subr.mxu0 0.0
    %1745 = vmatpush1.msra.mxu0 0.0
    %1746 = vmatprep.subr.mxu0 0.0
    %1747 = vmatpush1.msra.mxu0 0.0
    %1748 = vmatprep.subr.mxu0 0.0
    %1749 = vmatpush1.msra.mxu0 0.0
    %1750 = vmatprep.subr.mxu0 0.0
    %1751 = vmatpush1.msra.mxu0 0.0
    %1752 = vmatprep.subr.mxu0 0.0
    %1753 = vmatpush1.msra.mxu0 0.0
    %1754 = vmatprep.subr.mxu0 0.0
    %1755 = vmatpush1.msra.mxu0 0.0
    %1756 = vmatprep.subr.mxu0 0.0
    %1757 = vmatpush1.msra.mxu0 0.0
    %1758 = vmatprep.subr.mxu0 0.0
    %1759 = vmatpush1.msra.mxu0 0.0
    %1760 = vmatprep.subr.mxu0 0.0
    %1761 = vmatpush1.msra.mxu0 0.0
    %1762 = vmatprep.mubr.f32.mxu0 0.0
    %1763 = vmatmul.mubr.f32.gmra.mrb[0].mxu0 %v1696
    %v1764 = vpop.f32.mrb[0].mxu0
    %v1765 = vadd.f32 %v1692, %v1764
    %v1766 = vpop.f32.mrb[0].mxu0
    %1767 = vdwg.mxu0
    %s1768 = scalar_lea.vmem %s9, 4
    %v1769 = vld [vmem:[%s1768] sm:$0x3]
    %v1771 = vsel %vm1464, %v1769, 0
    %1773 = vmatprep.subr.mxu0 0.0
    %1774 = vmatpush1.msra.mxu0 %v1462
    %1775 = vmatprep.subr.mxu0 0.0
    %1776 = vmatpush1.msra.mxu0 0.0
    %1777 = vmatprep.subr.mxu0 0.0
    %1778 = vmatpush1.msra.mxu0 0.0
    %1779 = vmatprep.subr.mxu0 0.0
    %1780 = vmatpush1.msra.mxu0 0.0
    %1781 = vmatprep.subr.mxu0 0.0
    %1782 = vmatpush1.msra.mxu0 0.0
    %1783 = vmatprep.subr.mxu0 0.0
    %1784 = vmatpush1.msra.mxu0 0.0
    %1785 = vmatprep.subr.mxu0 0.0
    %1786 = vmatpush1.msra.mxu0 0.0
    %1787 = vmatprep.subr.mxu0 0.0
    %1788 = vmatpush1.msra.mxu0 0.0
    %1789 = vmatprep.subr.mxu0 0.0
    %1790 = vmatpush1.msra.mxu0 0.0
    %1791 = vmatprep.subr.mxu0 0.0
    %1792 = vmatpush1.msra.mxu0 0.0
    %1793 = vmatprep.subr.mxu0 0.0
    %1794 = vmatpush1.msra.mxu0 0.0
    %1795 = vmatprep.subr.mxu0 0.0
    %1796 = vmatpush1.msra.mxu0 0.0
    %1797 = vmatprep.subr.mxu0 0.0
    %1798 = vmatpush1.msra.mxu0 0.0
    %1799 = vmatprep.subr.mxu0 0.0
    %1800 = vmatpush1.msra.mxu0 0.0
    %1801 = vmatprep.subr.mxu0 0.0
    %1802 = vmatpush1.msra.mxu0 0.0
    %1803 = vmatprep.subr.mxu0 0.0
    %1804 = vmatpush1.msra.mxu0 0.0
    %1805 = vmatprep.subr.mxu0 0.0
    %1806 = vmatpush1.msra.mxu0 0.0
    %1807 = vmatprep.subr.mxu0 0.0
    %1808 = vmatpush1.msra.mxu0 0.0
    %1809 = vmatprep.subr.mxu0 0.0
    %1810 = vmatpush1.msra.mxu0 0.0
    %1811 = vmatprep.subr.mxu0 0.0
    %1812 = vmatpush1.msra.mxu0 0.0
    %1813 = vmatprep.subr.mxu0 0.0
    %1814 = vmatpush1.msra.mxu0 0.0
    %1815 = vmatprep.subr.mxu0 0.0
    %1816 = vmatpush1.msra.mxu0 0.0
    %1817 = vmatprep.subr.mxu0 0.0
    %1818 = vmatpush1.msra.mxu0 0.0
    %1819 = vmatprep.subr.mxu0 0.0
    %1820 = vmatpush1.msra.mxu0 0.0
    %1821 = vmatprep.subr.mxu0 0.0
    %1822 = vmatpush1.msra.mxu0 0.0
    %1823 = vmatprep.subr.mxu0 0.0
    %1824 = vmatpush1.msra.mxu0 0.0
    %1825 = vmatprep.subr.mxu0 0.0
    %1826 = vmatpush1.msra.mxu0 0.0
    %1827 = vmatprep.subr.mxu0 0.0
    %1828 = vmatpush1.msra.mxu0 0.0
    %1829 = vmatprep.subr.mxu0 0.0
    %1830 = vmatpush1.msra.mxu0 0.0
    %1831 = vmatprep.subr.mxu0 0.0
    %1832 = vmatpush1.msra.mxu0 0.0
    %1833 = vmatprep.subr.mxu0 0.0
    %1834 = vmatpush1.msra.mxu0 0.0
    %1835 = vmatprep.subr.mxu0 0.0
    %1836 = vmatpush1.msra.mxu0 0.0
    %1837 = vmatprep.mubr.f32.mxu0 0.0
    %1838 = vmatmul.mubr.f32.gmra.mrb[0].mxu0 %v1771
    %v1839 = vpop.f32.mrb[0].mxu0
    %v1840 = vadd.f32 0.0, %v1839
    %v1841 = vpop.f32.mrb[0].mxu0
    %1842 = vdwg.mxu0
    %s1843 = scalar_lea.vmem [#allocation13], 64
    %v1844 = vld [vmem:[%s1843] sm:$0xff]
    %v1845 = vld [vmem:[%s1843 + $0x8] sm:$0xff]
    %v1846 = vld [vmem:[%s1843 + $0x10] sm:$0xff]
    %v1847 = vld [vmem:[%s1843 + $0x18] sm:$0xff]
    %v1849 = vsel %vm148, %v1840, 0
    %1851 = vmatprep.subr.mxu0 0.0
    %1852 = vmatpush1.msra.mxu0 %v1844
    %1853 = vmatprep.subr.mxu0 0.0
    %1854 = vmatpush1.msra.mxu0 %v1845
    %1855 = vmatprep.subr.mxu0 0.0
    %1856 = vmatpush1.msra.mxu0 %v1846
    %1857 = vmatprep.subr.mxu0 0.0
    %1858 = vmatpush1.msra.mxu0 %v1847
    %1859 = vmatprep.subr.mxu0 0.0
    %1860 = vmatpush1.msra.mxu0 0.0
    %1861 = vmatprep.subr.mxu0 0.0
    %1862 = vmatpush1.msra.mxu0 0.0
    %1863 = vmatprep.subr.mxu0 0.0
    %1864 = vmatpush1.msra.mxu0 0.0
    %1865 = vmatprep.subr.mxu0 0.0
    %1866 = vmatpush1.msra.mxu0 0.0
    %1867 = vmatprep.subr.mxu0 0.0
    %1868 = vmatpush1.msra.mxu0 0.0
    %1869 = vmatprep.subr.mxu0 0.0
    %1870 = vmatpush1.msra.mxu0 0.0
    %1871 = vmatprep.subr.mxu0 0.0
    %1872 = vmatpush1.msra.mxu0 0.0
    %1873 = vmatprep.subr.mxu0 0.0
    %1874 = vmatpush1.msra.mxu0 0.0
    %1875 = vmatprep.subr.mxu0 0.0
    %1876 = vmatpush1.msra.mxu0 0.0
    %1877 = vmatprep.subr.mxu0 0.0
    %1878 = vmatpush1.msra.mxu0 0.0
    %1879 = vmatprep.subr.mxu0 0.0
    %1880 = vmatpush1.msra.mxu0 0.0
    %1881 = vmatprep.subr.mxu0 0.0
    %1882 = vmatpush1.msra.mxu0 0.0
    %1883 = vmatprep.subr.mxu0 0.0
    %1884 = vmatpush1.msra.mxu0 0.0
    %1885 = vmatprep.subr.mxu0 0.0
    %1886 = vmatpush1.msra.mxu0 0.0
    %1887 = vmatprep.subr.mxu0 0.0
    %1888 = vmatpush1.msra.mxu0 0.0
    %1889 = vmatprep.subr.mxu0 0.0
    %1890 = vmatpush1.msra.mxu0 0.0
    %1891 = vmatprep.subr.mxu0 0.0
    %1892 = vmatpush1.msra.mxu0 0.0
    %1893 = vmatprep.subr.mxu0 0.0
    %1894 = vmatpush1.msra.mxu0 0.0
    %1895 = vmatprep.subr.mxu0 0.0
    %1896 = vmatpush1.msra.mxu0 0.0
    %1897 = vmatprep.subr.mxu0 0.0
    %1898 = vmatpush1.msra.mxu0 0.0
    %1899 = vmatprep.subr.mxu0 0.0
    %1900 = vmatpush1.msra.mxu0 0.0
    %1901 = vmatprep.subr.mxu0 0.0
    %1902 = vmatpush1.msra.mxu0 0.0
    %1903 = vmatprep.subr.mxu0 0.0
    %1904 = vmatpush1.msra.mxu0 0.0
    %1905 = vmatprep.subr.mxu0 0.0
    %1906 = vmatpush1.msra.mxu0 0.0
    %1907 = vmatprep.subr.mxu0 0.0
    %1908 = vmatpush1.msra.mxu0 0.0
    %1909 = vmatprep.subr.mxu0 0.0
    %1910 = vmatpush1.msra.mxu0 0.0
    %1911 = vmatprep.subr.mxu0 0.0
    %1912 = vmatpush1.msra.mxu0 0.0
    %1913 = vmatprep.subr.mxu0 0.0
    %1914 = vmatpush1.msra.mxu0 0.0
    %1915 = vmatprep.mubr.f32.mxu0 0.0
    %1916 = vmatmul.mubr.f32.gmra.mrb[0].mxu0 %v1849
    %v1917 = vpop.f32.mrb[0].mxu0
    %v1918 = vadd.f32 0.0, %v1917
    %v1919 = vpop.f32.mrb[0].mxu0
    %1920 = vdwg.mxu0
    %v1921 = vadd.f32 %v1765, %v1918
    %s1922 = scalar_lea.vmem %s9, 6
    %v1923 = vld [vmem:[%s1922] sm:$0x3]
    %v1925 = vsel %vm1464, %v1923, 0
    %1927 = vmatprep.subr.mxu0 0.0
    %1928 = vmatpush1.msra.mxu0 %v1462
    %1929 = vmatprep.subr.mxu0 0.0
    %1930 = vmatpush1.msra.mxu0 0.0
    %1931 = vmatprep.subr.mxu0 0.0
    %1932 = vmatpush1.msra.mxu0 0.0
    %1933 = vmatprep.subr.mxu0 0.0
    %1934 = vmatpush1.msra.mxu0 0.0
    %1935 = vmatprep.subr.mxu0 0.0
    %1936 = vmatpush1.msra.mxu0 0.0
    %1937 = vmatprep.subr.mxu0 0.0
    %1938 = vmatpush1.msra.mxu0 0.0
    %1939 = vmatprep.subr.mxu0 0.0
    %1940 = vmatpush1.msra.mxu0 0.0
    %1941 = vmatprep.subr.mxu0 0.0
    %1942 = vmatpush1.msra.mxu0 0.0
    %1943 = vmatprep.subr.mxu0 0.0
    %1944 = vmatpush1.msra.mxu0 0.0
    %1945 = vmatprep.subr.mxu0 0.0
    %1946 = vmatpush1.msra.mxu0 0.0
    %1947 = vmatprep.subr.mxu0 0.0
    %1948 = vmatpush1.msra.mxu0 0.0
    %1949 = vmatprep.subr.mxu0 0.0
    %1950 = vmatpush1.msra.mxu0 0.0
    %1951 = vmatprep.subr.mxu0 0.0
    %1952 = vmatpush1.msra.mxu0 0.0
    %1953 = vmatprep.subr.mxu0 0.0
    %1954 = vmatpush1.msra.mxu0 0.0
    %1955 = vmatprep.subr.mxu0 0.0
    %1956 = vmatpush1.msra.mxu0 0.0
    %1957 = vmatprep.subr.mxu0 0.0
    %1958 = vmatpush1.msra.mxu0 0.0
    %1959 = vmatprep.subr.mxu0 0.0
    %1960 = vmatpush1.msra.mxu0 0.0
    %1961 = vmatprep.subr.mxu0 0.0
    %1962 = vmatpush1.msra.mxu0 0.0
    %1963 = vmatprep.subr.mxu0 0.0
    %1964 = vmatpush1.msra.mxu0 0.0
    %1965 = vmatprep.subr.mxu0 0.0
    %1966 = vmatpush1.msra.mxu0 0.0
    %1967 = vmatprep.subr.mxu0 0.0
    %1968 = vmatpush1.msra.mxu0 0.0
    %1969 = vmatprep.subr.mxu0 0.0
    %1970 = vmatpush1.msra.mxu0 0.0
    %1971 = vmatprep.subr.mxu0 0.0
    %1972 = vmatpush1.msra.mxu0 0.0
    %1973 = vmatprep.subr.mxu0 0.0
    %1974 = vmatpush1.msra.mxu0 0.0
    %1975 = vmatprep.subr.mxu0 0.0
    %1976 = vmatpush1.msra.mxu0 0.0
    %1977 = vmatprep.subr.mxu0 0.0
    %1978 = vmatpush1.msra.mxu0 0.0
    %1979 = vmatprep.subr.mxu0 0.0
    %1980 = vmatpush1.msra.mxu0 0.0
    %1981 = vmatprep.subr.mxu0 0.0
    %1982 = vmatpush1.msra.mxu0 0.0
    %1983 = vmatprep.subr.mxu0 0.0
    %1984 = vmatpush1.msra.mxu0 0.0
    %1985 = vmatprep.subr.mxu0 0.0
    %1986 = vmatpush1.msra.mxu0 0.0
    %1987 = vmatprep.subr.mxu0 0.0
    %1988 = vmatpush1.msra.mxu0 0.0
    %1989 = vmatprep.subr.mxu0 0.0
    %1990 = vmatpush1.msra.mxu0 0.0
    %1991 = vmatprep.mubr.f32.mxu0 0.0
    %1992 = vmatmul.mubr.f32.gmra.mrb[0].mxu0 %v1925
    %v1993 = vpop.f32.mrb[0].mxu0
    %v1994 = vadd.f32 0.0, %v1993
    %v1995 = vpop.f32.mrb[0].mxu0
    %1996 = vdwg.mxu0
    %s1997 = scalar_lea.vmem [#allocation13], 96
    %v1998 = vld [vmem:[%s1997] sm:$0xff]
    %v1999 = vld [vmem:[%s1997 + $0x8] sm:$0xff]
    %v2000 = vld [vmem:[%s1997 + $0x10] sm:$0xff]
    %v2001 = vld [vmem:[%s1997 + $0x18] sm:$0xff]
    %v2003 = vsel %vm148, %v1994, 0
    %2005 = vmatprep.subr.mxu0 0.0
    %2006 = vmatpush1.msra.mxu0 %v1998
    %2007 = vmatprep.subr.mxu0 0.0
    %2008 = vmatpush1.msra.mxu0 %v1999
    %2009 = vmatprep.subr.mxu0 0.0
    %2010 = vmatpush1.msra.mxu0 %v2000
    %2011 = vmatprep.subr.mxu0 0.0
    %2012 = vmatpush1.msra.mxu0 %v2001
    %2013 = vmatprep.subr.mxu0 0.0
    %2014 = vmatpush1.msra.mxu0 0.0
    %2015 = vmatprep.subr.mxu0 0.0
    %2016 = vmatpush1.msra.mxu0 0.0
    %2017 = vmatprep.subr.mxu0 0.0
    %2018 = vmatpush1.msra.mxu0 0.0
    %2019 = vmatprep.subr.mxu0 0.0
    %2020 = vmatpush1.msra.mxu0 0.0
    %2021 = vmatprep.subr.mxu0 0.0
    %2022 = vmatpush1.msra.mxu0 0.0
    %2023 = vmatprep.subr.mxu0 0.0
    %2024 = vmatpush1.msra.mxu0 0.0
    %2025 = vmatprep.subr.mxu0 0.0
    %2026 = vmatpush1.msra.mxu0 0.0
    %2027 = vmatprep.subr.mxu0 0.0
    %2028 = vmatpush1.msra.mxu0 0.0
    %2029 = vmatprep.subr.mxu0 0.0
    %2030 = vmatpush1.msra.mxu0 0.0
    %2031 = vmatprep.subr.mxu0 0.0
    %2032 = vmatpush1.msra.mxu0 0.0
    %2033 = vmatprep.subr.mxu0 0.0
    %2034 = vmatpush1.msra.mxu0 0.0
    %2035 = vmatprep.subr.mxu0 0.0
    %2036 = vmatpush1.msra.mxu0 0.0
    %2037 = vmatprep.subr.mxu0 0.0
    %2038 = vmatpush1.msra.mxu0 0.0
    %2039 = vmatprep.subr.mxu0 0.0
    %2040 = vmatpush1.msra.mxu0 0.0
    %2041 = vmatprep.subr.mxu0 0.0
    %2042 = vmatpush1.msra.mxu0 0.0
    %2043 = vmatprep.subr.mxu0 0.0
    %2044 = vmatpush1.msra.mxu0 0.0
    %2045 = vmatprep.subr.mxu0 0.0
    %2046 = vmatpush1.msra.mxu0 0.0
    %2047 = vmatprep.subr.mxu0 0.0
    %2048 = vmatpush1.msra.mxu0 0.0
    %2049 = vmatprep.subr.mxu0 0.0
    %2050 = vmatpush1.msra.mxu0 0.0
    %2051 = vmatprep.subr.mxu0 0.0
    %2052 = vmatpush1.msra.mxu0 0.0
    %2053 = vmatprep.subr.mxu0 0.0
    %2054 = vmatpush1.msra.mxu0 0.0
    %2055 = vmatprep.subr.mxu0 0.0
    %2056 = vmatpush1.msra.mxu0 0.0
    %2057 = vmatprep.subr.mxu0 0.0
    %2058 = vmatpush1.msra.mxu0 0.0
    %2059 = vmatprep.subr.mxu0 0.0
    %2060 = vmatpush1.msra.mxu0 0.0
    %2061 = vmatprep.subr.mxu0 0.0
    %2062 = vmatpush1.msra.mxu0 0.0
    %2063 = vmatprep.subr.mxu0 0.0
    %2064 = vmatpush1.msra.mxu0 0.0
    %2065 = vmatprep.subr.mxu0 0.0
    %2066 = vmatpush1.msra.mxu0 0.0
    %2067 = vmatprep.subr.mxu0 0.0
    %2068 = vmatpush1.msra.mxu0 0.0
    %2069 = vmatprep.mubr.f32.mxu0 0.0
    %2070 = vmatmul.mubr.f32.gmra.mrb[0].mxu0 %v2003
    %v2071 = vpop.f32.mrb[0].mxu0
    %v2072 = vadd.f32 0.0, %v2071
    %v2073 = vpop.f32.mrb[0].mxu0
    %2074 = vdwg.mxu0
    %v2075 = vadd.f32 %v1921, %v2072
    %v2076 = vld [vmem:[%s11] sm:$0x1]
    %v2078 = vlaneseq
    %v2079 = vshrl.u32 %v2078, 7
    %v2080 = vsub.s32 0, %v2079
    %v2081 = vrot.slane %v2076, %v2080
    %v2083 = vadd.f32 %v2075, %v2081
    %2084 = vst [vmem:[#allocation14] sm:$0x3] %v2083
    // Predicated region
    $region78: #{_lambda_.1} parent=1 // pred_check
      _
    $region79: #{_lambda_.1} parent=1 // pred_check_branch
      %2086 = sbr.rel (0) target = $region81
    $region80: #{_lambda_.1} parent=1 // pred_region
      %s2088 = ssub.s32 32, 32
      %2089 = vsyncadd [#allocation4], %s2088
      %s2091 = sshll.u32 [#allocation14], 4
      %s2092 = int_to_ptr.vmem [resolvable:$true] %s2091
      %2094 = dma.vmem_to_hbm [thread:$0]  %s2092, 32, %s12, [#allocation4]
    $region81: #{_lambda_.1} parent=1 // pred_fallthru
      _
    // Predicated region
    $region82: #{_lambda_.1} parent=1 // pred_check
      _
    $region83: #{_lambda_.1} parent=1 // pred_check_branch
      %2096 = sbr.rel (0) target = $region85
    $region84: #{_lambda_.1} parent=1 // pred_region
      %2097 = dma.done [#allocation4], 32
    $region85: #{_lambda_.1} parent=1 // pred_fallthru
      _
    %2098 = vsyncpa [#allocation3], 1
    %2099 = vsyncpa [#allocation6], 1
    %2100 = vsyncpa [#allocation9], 1
    %2101 = vsyncpa [#allocation12], 1
    %2102 = vsyncpa [#allocation4], 1

</llo_original>
